<compile_context>
chip_gen: v5e
topology: v5e:2x2
jax: 0.10.0
libtpu: 0.0.40
codegen_flags: <defaults>
</compile_context>

<pallas_src>
import functools
import numpy as np
import jax
import jax.numpy as jnp
from jax.experimental import pallas as pl
from jax.experimental.pallas import tpu as pltpu


# ----------------------------- parameter setup -----------------------------

def _expm_np(M, order=24):
    """Matrix exponential (scaling & squaring + Taylor), numpy float64."""
    norm = np.linalg.norm(M, ord=np.inf)
    s = max(0, int(np.ceil(np.log2(max(norm, 1e-12)))) + 1)
    A = M / (2.0 ** s)
    n = M.shape[0]
    E = np.eye(n, dtype=np.float64)
    term = np.eye(n, dtype=np.float64)
    for k in range(1, order + 1):
        term = term @ A / k
        E = E + term
    for _ in range(s):
        E = E @ E
    return E


def state_space_matrices(memory_size, theta):
    """Discretized (ZOH, dt=1) LTI matrices A, B of the LMU cell."""
    Q = np.arange(memory_size, dtype=np.float64).reshape(-1, 1)
    R = (2 * Q + 1) / theta
    i, j = np.meshgrid(Q, Q, indexing="ij")
    A = R * np.where(i < j, -1, (-1.0) ** (i - j + 1))
    B = R * (-1.0) ** Q
    n = memory_size
    Maug = np.zeros((n + 1, n + 1), dtype=np.float64)
    Maug[:n, :n] = A
    Maug[:n, n:] = B
    EM = _expm_np(Maug)
    Ad = EM[:n, :n].astype(np.float32)
    Bd = EM[:n, n:].astype(np.float32)  # (memory_size, 1)
    return Ad, Bd


def init_params(key, input_size, output_size, hidden_size, memory_size, theta):
    """Deterministic init mirroring LMUCell.initParameters(psmnist=True)."""
    k_ex, k_wm, k_wc, k_bc = jax.random.split(key, 4)

    limit_ex = np.sqrt(3.0 / input_size)  # LeCun uniform
    e_x = jax.random.uniform(k_ex, (1, input_size), jnp.float32,
                             -limit_ex, limit_ex)
    e_h = jnp.zeros((1, hidden_size), jnp.float32)
    e_m = jnp.zeros((1, memory_size), jnp.float32)
    W_x = jnp.zeros((hidden_size, input_size), jnp.float32)
    W_h = jnp.zeros((hidden_size, hidden_size), jnp.float32)
    std_wm = np.sqrt(2.0 / (hidden_size + memory_size))  # xavier normal
    W_m = std_wm * jax.random.normal(k_wm, (hidden_size, memory_size),
                                     jnp.float32)

    A, B = state_space_matrices(memory_size, theta)
    A = jnp.asarray(A)                      # (M, M)
    B_row = jnp.asarray(B.T)                # (1, M) = B^T

    bound = 1.0 / np.sqrt(hidden_size)
    Wc = jax.random.uniform(k_wc, (output_size, hidden_size), jnp.float32,
                            -bound, bound)
    bc = jax.random.uniform(k_bc, (1, output_size), jnp.float32, -bound, bound)

    return dict(e_x=e_x, e_h=e_h, e_m=e_m, W_x=W_x, W_h=W_h, W_m=W_m,
                A=A, B_row=B_row, Wc=Wc, bc=bc)


# --------------------------------- kernel ----------------------------------

def lmu_recurrence_kernel(xw_ref, b_row_ref, hw_ref, a_aug_ref, wm_t_ref,
                          h_out_ref, h_scr, m_scr,
                          *, t_chunk, seq_len, xe_lane, mp, need_mask, unroll):
    c = pl.program_id(1)

    @pl.when(c == 0)
    def _():
        h_scr[...] = jnp.zeros_like(h_scr)
        m_scr[...] = jnp.zeros_like(m_scr)

    # Only the tiny (1, Mp) row lives in vregs across the loop; the weight
    # tiles are read from their VMEM refs right where the MXU consumes them.
    b_row = b_row_ref[...]                       # (1, Mp)  f32
    cdt = hw_ref.dtype                           # MXU operand dtype
    t_base = c * t_chunk

    def step(i, carry):
        h, m = carry                             # f32 (Bb, Hp), (Bb, Mp)
        xw_t = xw_ref[i]                         # (Bb, Hp) = [x W_x^T | 0 | x e_x^T]
        xe_t = xw_t[:, xe_lane:xe_lane + 1]      # (Bb, 1)  = x_t @ e_x^T

        h_c = h.astype(cdt)
        # One dot covers both h-terms:  h @ [e_h^T B^T | W_h^T] -> (Bb, Mp+Hp)
        hw = jnp.dot(h_c, hw_ref[...], preferred_element_type=jnp.float32)
        # m' = m (A^T + e_m^T B^T) + (h e_h^T) B^T + (x e_x^T) B^T
        m_new = (jnp.dot(m.astype(cdt), a_aug_ref[...],
                         preferred_element_type=jnp.float32)
                 + hw[:, :mp] + xe_t * b_row)
        # h' = tanh(x W_x^T + h W_h^T + m' W_m^T)
        h_new = jnp.tanh(
            xw_t + hw[:, mp:]
            + jnp.dot(m_new.astype(cdt), wm_t_ref[...],
                      preferred_element_type=jnp.float32))

        if need_mask:
            valid = (t_base + i) < seq_len
            h_new = jnp.where(valid, h_new, h)
            m_new = jnp.where(valid, m_new, m)
        return (h_new, m_new)

    h, m = jax.lax.fori_loop(0, t_chunk, step, (h_scr[...], m_scr[...]),
                             unroll=unroll)
    h_scr[...] = h
    m_scr[...] = m

    @pl.when(c == pl.num_programs(1) - 1)
    def _():
        h_out_ref[...] = h


# -------------------------------- wrapper -----------------------------------

def _round_up(x, m):
    return (x + m - 1) // m * m


def _largest_divisor_leq(n, cap):
    for d in range(min(n, cap), 0, -1):
        if n % d == 0:
            return d
    return 1


def _device_kind():
    try:
        return jax.devices()[0].device_kind.lower()
    except Exception:
        return ""


def model_forward(x, params, *, t_chunk=None, mxu_dtype=jnp.float32):
    """x: [batch, seq, input_size] float32 -> logits [batch, output_size]."""
    Bsz, S, I = x.shape
    H = params["W_h"].shape[0]
    M = params["A"].shape[0]
    f32 = jnp.float32
    wdt = jnp.dtype(mxu_dtype)

    # ---- lane padding: reserve one spare h-lane to carry x @ e_x^T ----
    Hp = _round_up(H, 128)
    if Hp == H:
        Hp += 128
    xe_lane = Hp - 1
    Mp = _round_up(M, 128)

    # ---- batch blocking (best-effort generation awareness) ----
    kind = _device_kind()
    wide_mxu = ("v6" in kind) or ("7" in kind)   # 256-wide MXU generations
    two_cores = "7" in kind                      # 2 TensorCores per chip

    B_blk = min(128, _round_up(Bsz, 8))
    if wide_mxu and Bsz >= 256:
        B_blk = 256
    Bp = _round_up(Bsz, B_blk)
    if two_cores and Bsz >= 16 and Bp // B_blk < 2:
        B_blk = _round_up(_round_up(Bsz, 8) // 2, 8)  # >=2 parallel batch blocks
        Bp = _round_up(Bsz, B_blk)

    # ---- time chunking: prefer a divisor of S so masking compiles away ----
    xw_step_bytes = B_blk * Hp * 4
    tc_cap = int(max(8, min(128, (16 << 20) // (2 * xw_step_bytes))))
    tc_cap = min(tc_cap, S)
    if t_chunk is not None:
        tc = max(1, min(int(t_chunk), S))
    else:
        tc = _largest_divisor_leq(S, tc_cap)
        if tc < max(1, tc_cap // 4):     # poor divisor -> pad + mask instead
            tc = tc_cap
    n_chunks = -(-S // tc)
    S_pad = n_chunks * tc
    need_mask = (S_pad != S)
    unroll = 1
    for d in range(min(8, tc), 0, -1):
        if tc % d == 0:
            unroll = d
            break

    # ---- weights: fold the u-projection into the recurrent matmuls ----
    #   m' = m (A^T + e_m^T B^T) + h (e_h^T B^T) + (x e_x^T) B^T
    #   h' = tanh(x W_x^T + h W_h^T + m' W_m^T)
    A_aug = jnp.zeros((Mp, Mp), wdt).at[:M, :M].set(
        (params["A"].T + params["e_m"].T @ params["B_row"]).astype(wdt))
    HW = jnp.zeros((Hp, Mp + Hp), wdt)
    HW = HW.at[:H, :M].set((params["e_h"].T @ params["B_row"]).astype(wdt))
    HW = HW.at[:H, Mp:Mp + H].set(params["W_h"].T.astype(wdt))
    Wm_T = jnp.zeros((Mp, Hp), wdt).at[:M, :H].set(params["W_m"].T.astype(wdt))
    B_row = jnp.zeros((1, Mp), f32).at[:, :M].set(params["B_row"])

    # ---- hoisted x-terms, built directly in padded layout (no zeros+set) ----
    # Wx_aug packs W_x^T into lanes [0:H] and e_x^T into the spare lane.
    Wx_aug = jnp.zeros((I, Hp), f32)
    Wx_aug = Wx_aug.at[:, :H].set(params["W_x"].T)
    Wx_aug = Wx_aug.at[:, xe_lane].set(params["e_x"][0])
    x_p = x.astype(f32)
    if Bp != Bsz or S_pad != S:
        x_p = jnp.pad(x_p, ((0, Bp - Bsz), (0, S_pad - S), (0, 0)))
    xw_p = jnp.einsum("bsi,ih->sbh", x_p, Wx_aug)     # (S_pad, Bp, Hp)

    # ---- VMEM budget (double-buffered stream + weights + out + scratch) ----
    wbytes = wdt.itemsize
    est = (2 * tc * B_blk * Hp * 4
           + 2 * (Hp * (Mp + Hp) + Mp * Mp + Mp * Hp) * wbytes + 2 * Mp * 4
           + 2 * B_blk * Hp * 4
           + B_blk * (Hp + Mp) * 4)
    vmem_limit = int(min(max(2 * est, 32 << 20), 56 << 20))

    kernel = functools.partial(
        lmu_recurrence_kernel, t_chunk=tc, seq_len=S, xe_lane=xe_lane, mp=Mp,
        need_mask=need_mask, unroll=unroll)

    const2 = lambda b, c: (0, 0)
    grid_spec = pltpu.PrefetchScalarGridSpec(
        num_scalar_prefetch=0,
        grid=(Bp // B_blk, n_chunks),
        in_specs=[
            pl.BlockSpec((tc, B_blk, Hp), lambda b, c: (c, b, 0)),  # x-proj stream
            pl.BlockSpec((1, Mp), const2),          # B^T
            pl.BlockSpec((Hp, Mp + Hp), const2),    # [e_h^T B^T | W_h^T]
            pl.BlockSpec((Mp, Mp), const2),         # A^T + e_m^T B^T
            pl.BlockSpec((Mp, Hp), const2),         # W_m^T
        ],
        out_specs=pl.BlockSpec((B_blk, Hp), lambda b, c: (b, 0)),
        scratch_shapes=[
            pltpu.VMEM((B_blk, Hp), f32),   # h state (persists across chunks)
            pltpu.VMEM((B_blk, Mp), f32),   # m state
        ],
    )

    h_final = pl.pallas_call(
        kernel,
        out_shape=jax.ShapeDtypeStruct((Bp, Hp), f32),
        grid_spec=grid_spec,
        compiler_params=pltpu.CompilerParams(
            dimension_semantics=("parallel", "arbitrary"),
            vmem_limit_bytes=vmem_limit),
    )(xw_p, B_row, HW, A_aug, Wm_T)

    # Tiny lane-sparse (B,H)x(H,O) classifier kept in XLA (per perf review).
    h_final = h_final[:Bsz, :H]
    return h_final @ params["Wc"].T + params["bc"]


# ------------------------------ pure-JAX ref --------------------------------

def model_forward_ref(x, params):
    Bsz, S, I = x.shape
    H = params["W_h"].shape[0]
    M = params["A"].shape[0]
    h = jnp.zeros((Bsz, H), jnp.float32)
    m = jnp.zeros((Bsz, M), jnp.float32)
    for t in range(S):
        x_t = x[:, t, :]
        u = (x_t @ params["e_x"].T + h @ params["e_h"].T + m @ params["e_m"].T)
        m = m @ params["A"].T + u @ params["B_row"]
        h = jnp.tanh(x_t @ params["W_x"].T + h @ params["W_h"].T
                     + m @ params["W_m"].T)
    return h @ params["Wc"].T + params["bc"]


# --------------------------------- main -------------------------------------

if __name__ == "__main__":
    batch, seq_len = 4, 8
    input_size, output_size = 4, 10
    hidden_size, memory_size, theta = 32, 16, 8

    key = jax.random.PRNGKey(0)
    k_param, k_x = jax.random.split(key)
    params = init_params(k_param, input_size, output_size,
                         hidden_size, memory_size, theta)
    x = jax.random.normal(k_x, (batch, seq_len, input_size), jnp.float32)

    ref = model_forward_ref(x, params)

    # Exact (f32 MXU) path — strict check.
    out = jax.block_until_ready(model_forward(x, params))
    np.testing.assert_allclose(np.asarray(out), np.asarray(ref),
                               rtol=1e-3, atol=1e-4)

    # bf16-operand / f32-accumulate path (perf-review item) — loose check.
    out_bf16 = jax.block_until_ready(
        model_forward(x, params, mxu_dtype=jnp.bfloat16))
    np.testing.assert_allclose(np.asarray(out_bf16), np.asarray(ref),
                               rtol=5e-2, atol=5e-2)

    assert out.shape == (batch, output_size)
    print("KERNEL_OK")
</pallas_src>

<mosaic_0001>
module attributes {stable_mosaic.version = 11 : i64} {
  func.func @lmu_recurrence_kernel(%arg0: i32, %arg1: i32, %arg2: memref<8x8x128xf32, #tpu.memory_space<vmem>>, %arg3: memref<1x128xf32, #tpu.memory_space<vmem>>, %arg4: memref<128x256xf32, #tpu.memory_space<vmem>>, %arg5: memref<128x128xf32, #tpu.memory_space<vmem>>, %arg6: memref<128x128xf32, #tpu.memory_space<vmem>>, %arg7: memref<8x128xf32, #tpu.memory_space<vmem>>, %arg8: memref<8x128xf32, #tpu.memory_space<vmem>>, %arg9: memref<8x128xf32, #tpu.memory_space<vmem>>) attributes {dimension_semantics = [#tpu.dimension_semantics<parallel>, #tpu.dimension_semantics<arbitrary>], iteration_bounds = array<i64: 1, 1>, scalar_prefetch = 0 : i64, scratch_operands = 2 : i64, tpu.core_type = #tpu.core_type<tc>, window_params = [{transform_indices = @transform_0, window_bounds = array<i64: 8, 8, 128>}, {pipeline_mode = #tpu.pipeline_mode<synchronous>, transform_indices = @transform_1, window_bounds = array<i64: 1, 128>}, {pipeline_mode = #tpu.pipeline_mode<synchronous>, transform_indices = @transform_2, window_bounds = array<i64: 128, 256>}, {pipeline_mode = #tpu.pipeline_mode<synchronous>, transform_indices = @transform_3, window_bounds = array<i64: 128, 128>}, {pipeline_mode = #tpu.pipeline_mode<synchronous>, transform_indices = @transform_4, window_bounds = array<i64: 128, 128>}, {transform_indices = @transform_5, window_bounds = array<i64: 8, 128>}]} {
    %c0_i32 = arith.constant 0 : i32
    %0 = arith.cmpi eq, %arg1, %c0_i32 : i32
    %1 = arith.extui %0 : i1 to i32
    %c0_i32_0 = arith.constant 0 : i32
    %2 = arith.cmpi ne, %1, %c0_i32_0 : i32
    scf.if %2 {
      %cst_100 = arith.constant 0.000000e+00 : f32
      %171 = vector.broadcast %cst_100 : f32 to vector<8x128xf32>
      %c0_101 = arith.constant 0 : index
      %c0_102 = arith.constant 0 : index
      %172 = vector.load %arg8[%c0_101, %c0_102] : memref<8x128xf32, #tpu.memory_space<vmem>>, vector<8x128xf32>
      tpu.vector_store %arg8[%c0_101, %c0_102], %171 {strides = array<i32>} : memref<8x128xf32, #tpu.memory_space<vmem>>, vector<8x128xf32>,
      %cst_103 = arith.constant 0.000000e+00 : f32
      %173 = vector.broadcast %cst_103 : f32 to vector<8x128xf32>
      %c0_104 = arith.constant 0 : index
      %c0_105 = arith.constant 0 : index
      %174 = vector.load %arg9[%c0_104, %c0_105] : memref<8x128xf32, #tpu.memory_space<vmem>>, vector<8x128xf32>
      tpu.vector_store %arg9[%c0_104, %c0_105], %173 {strides = array<i32>} : memref<8x128xf32, #tpu.memory_space<vmem>>, vector<8x128xf32>,
    } else {
    }
    %c0 = arith.constant 0 : index
    %c0_1 = arith.constant 0 : index
    %3 = vector.load %arg3[%c0, %c0_1] : memref<1x128xf32, #tpu.memory_space<vmem>>, vector<1x128xf32>
    %c0_2 = arith.constant 0 : index
    %c0_3 = arith.constant 0 : index
    %4 = vector.load %arg8[%c0_2, %c0_3] : memref<8x128xf32, #tpu.memory_space<vmem>>, vector<8x128xf32>
    %c0_4 = arith.constant 0 : index
    %c0_5 = arith.constant 0 : index
    %5 = vector.load %arg9[%c0_4, %c0_5] : memref<8x128xf32, #tpu.memory_space<vmem>>, vector<8x128xf32>
    %c0_i32_6 = arith.constant 0 : i32
    %6 = arith.index_cast %c0_i32_6 : i32 to index
    %c0_7 = arith.constant 0 : index
    %c0_8 = arith.constant 0 : index
    %7 = vector.load %arg2[%6, %c0_7, %c0_8] : memref<8x8x128xf32, #tpu.memory_space<vmem>>, vector<1x8x128xf32>
    %8 = vector.shape_cast %7 : vector<1x8x128xf32> to vector<8x128xf32>
    %9 = vector.extract_strided_slice %8 {offsets = [0, 127], sizes = [8, 1], strides = [1, 1]} : vector<8x128xf32> to vector<8x1xf32>
    %c0_9 = arith.constant 0 : index
    %c0_10 = arith.constant 0 : index
    %10 = vector.load %arg4[%c0_9, %c0_10] : memref<128x256xf32, #tpu.memory_space<vmem>>, vector<128x256xf32>
    %cst = arith.constant dense<0.000000e+00> : vector<8x256xf32>
    %11 = tpu.matmul %4, %10, %cst {dimension_numbers = #tpu.dot_dimension_numbers<[1], [0], [0], [1], [0, 0, 1, 1], [], []>} : vector<8x128xf32>, vector<128x256xf32>, vector<8x256xf32> -> vector<8x256xf32>
    %c0_11 = arith.constant 0 : index
    %c0_12 = arith.constant 0 : index
    %12 = vector.load %arg5[%c0_11, %c0_12] : memref<128x128xf32, #tpu.memory_space<vmem>>, vector<128x128xf32>
    %cst_13 = arith.constant dense<0.000000e+00> : vector<8x128xf32>
    %13 = tpu.matmul %5, %12, %cst_13 {dimension_numbers = #tpu.dot_dimension_numbers<[1], [0], [0], [1], [0, 0, 1, 1], [], []>} : vector<8x128xf32>, vector<128x128xf32>, vector<8x128xf32> -> vector<8x128xf32>
    %14 = vector.extract_strided_slice %11 {offsets = [0, 0], sizes = [8, 128], strides = [1, 1]} : vector<8x256xf32> to vector<8x128xf32>
    %15 = arith.addf %13, %14 : vector<8x128xf32>
    %16 = vector.broadcast %9 : vector<8x1xf32> to vector<8x128xf32>
    %17 = vector.broadcast %3 : vector<1x128xf32> to vector<8x128xf32>
    %18 = arith.mulf %16, %17 : vector<8x128xf32>
    %19 = arith.addf %15, %18 : vector<8x128xf32>
    %20 = vector.extract_strided_slice %11 {offsets = [0, 128], sizes = [8, 128], strides = [1, 1]} : vector<8x256xf32> to vector<8x128xf32>
    %21 = arith.addf %8, %20 : vector<8x128xf32>
    %c0_14 = arith.constant 0 : index
    %c0_15 = arith.constant 0 : index
    %22 = vector.load %arg6[%c0_14, %c0_15] : memref<128x128xf32, #tpu.memory_space<vmem>>, vector<128x128xf32>
    %cst_16 = arith.constant dense<0.000000e+00> : vector<8x128xf32>
    %23 = tpu.matmul %19, %22, %cst_16 {dimension_numbers = #tpu.dot_dimension_numbers<[1], [0], [0], [1], [0, 0, 1, 1], [], []>} : vector<8x128xf32>, vector<128x128xf32>, vector<8x128xf32> -> vector<8x128xf32>
    %24 = arith.addf %21, %23 : vector<8x128xf32>
    %25 = math.tanh %24 : vector<8x128xf32>
    %c1_i32 = arith.constant 1 : i32
    %26 = arith.index_cast %c1_i32 : i32 to index
    %c0_17 = arith.constant 0 : index
    %c0_18 = arith.constant 0 : index
    %27 = vector.load %arg2[%26, %c0_17, %c0_18] : memref<8x8x128xf32, #tpu.memory_space<vmem>>, vector<1x8x128xf32>
    %28 = vector.shape_cast %27 : vector<1x8x128xf32> to vector<8x128xf32>
    %29 = vector.extract_strided_slice %28 {offsets = [0, 127], sizes = [8, 1], strides = [1, 1]} : vector<8x128xf32> to vector<8x1xf32>
    %c0_19 = arith.constant 0 : index
    %c0_20 = arith.constant 0 : index
    %30 = vector.load %arg4[%c0_19, %c0_20] : memref<128x256xf32, #tpu.memory_space<vmem>>, vector<128x256xf32>
    %cst_21 = arith.constant dense<0.000000e+00> : vector<8x256xf32>
    %31 = tpu.matmul %25, %30, %cst_21 {dimension_numbers = #tpu.dot_dimension_numbers<[1], [0], [0], [1], [0, 0, 1, 1], [], []>} : vector<8x128xf32>, vector<128x256xf32>, vector<8x256xf32> -> vector<8x256xf32>
    %c0_22 = arith.constant 0 : index
    %c0_23 = arith.constant 0 : index
    %32 = vector.load %arg5[%c0_22, %c0_23] : memref<128x128xf32, #tpu.memory_space<vmem>>, vector<128x128xf32>
    %cst_24 = arith.constant dense<0.000000e+00> : vector<8x128xf32>
    %33 = tpu.matmul %19, %32, %cst_24 {dimension_numbers = #tpu.dot_dimension_numbers<[1], [0], [0], [1], [0, 0, 1, 1], [], []>} : vector<8x128xf32>, vector<128x128xf32>, vector<8x128xf32> -> vector<8x128xf32>
    %34 = vector.extract_strided_slice %31 {offsets = [0, 0], sizes = [8, 128], strides = [1, 1]} : vector<8x256xf32> to vector<8x128xf32>
    %35 = arith.addf %33, %34 : vector<8x128xf32>
    %36 = vector.broadcast %29 : vector<8x1xf32> to vector<8x128xf32>
    %37 = vector.broadcast %3 : vector<1x128xf32> to vector<8x128xf32>
    %38 = arith.mulf %36, %37 : vector<8x128xf32>
    %39 = arith.addf %35, %38 : vector<8x128xf32>
    %40 = vector.extract_strided_slice %31 {offsets = [0, 128], sizes = [8, 128], strides = [1, 1]} : vector<8x256xf32> to vector<8x128xf32>
    %41 = arith.addf %28, %40 : vector<8x128xf32>
    %c0_25 = arith.constant 0 : index
    %c0_26 = arith.constant 0 : index
    %42 = vector.load %arg6[%c0_25, %c0_26] : memref<128x128xf32, #tpu.memory_space<vmem>>, vector<128x128xf32>
    %cst_27 = arith.constant dense<0.000000e+00> : vector<8x128xf32>
    %43 = tpu.matmul %39, %42, %cst_27 {dimension_numbers = #tpu.dot_dimension_numbers<[1], [0], [0], [1], [0, 0, 1, 1], [], []>} : vector<8x128xf32>, vector<128x128xf32>, vector<8x128xf32> -> vector<8x128xf32>
    %44 = arith.addf %41, %43 : vector<8x128xf32>
    %45 = math.tanh %44 : vector<8x128xf32>
    %c2_i32 = arith.constant 2 : i32
    %46 = arith.index_cast %c2_i32 : i32 to index
    %c0_28 = arith.constant 0 : index
    %c0_29 = arith.constant 0 : index
    %47 = vector.load %arg2[%46, %c0_28, %c0_29] : memref<8x8x128xf32, #tpu.memory_space<vmem>>, vector<1x8x128xf32>
    %48 = vector.shape_cast %47 : vector<1x8x128xf32> to vector<8x128xf32>
    %49 = vector.extract_strided_slice %48 {offsets = [0, 127], sizes = [8, 1], strides = [1, 1]} : vector<8x128xf32> to vector<8x1xf32>
    %c0_30 = arith.constant 0 : index
    %c0_31 = arith.constant 0 : index
    %50 = vector.load %arg4[%c0_30, %c0_31] : memref<128x256xf32, #tpu.memory_space<vmem>>, vector<128x256xf32>
    %cst_32 = arith.constant dense<0.000000e+00> : vector<8x256xf32>
    %51 = tpu.matmul %45, %50, %cst_32 {dimension_numbers = #tpu.dot_dimension_numbers<[1], [0], [0], [1], [0, 0, 1, 1], [], []>} : vector<8x128xf32>, vector<128x256xf32>, vector<8x256xf32> -> vector<8x256xf32>
    %c0_33 = arith.constant 0 : index
    %c0_34 = arith.constant 0 : index
    %52 = vector.load %arg5[%c0_33, %c0_34] : memref<128x128xf32, #tpu.memory_space<vmem>>, vector<128x128xf32>
    %cst_35 = arith.constant dense<0.000000e+00> : vector<8x128xf32>
    %53 = tpu.matmul %39, %52, %cst_35 {dimension_numbers = #tpu.dot_dimension_numbers<[1], [0], [0], [1], [0, 0, 1, 1], [], []>} : vector<8x128xf32>, vector<128x128xf32>, vector<8x128xf32> -> vector<8x128xf32>
    %54 = vector.extract_strided_slice %51 {offsets = [0, 0], sizes = [8, 128], strides = [1, 1]} : vector<8x256xf32> to vector<8x128xf32>
    %55 = arith.addf %53, %54 : vector<8x128xf32>
    %56 = vector.broadcast %49 : vector<8x1xf32> to vector<8x128xf32>
    %57 = vector.broadcast %3 : vector<1x128xf32> to vector<8x128xf32>
    %58 = arith.mulf %56, %57 : vector<8x128xf32>
    %59 = arith.addf %55, %58 : vector<8x128xf32>
    %60 = vector.extract_strided_slice %51 {offsets = [0, 128], sizes = [8, 128], strides = [1, 1]} : vector<8x256xf32> to vector<8x128xf32>
    %61 = arith.addf %48, %60 : vector<8x128xf32>
    %c0_36 = arith.constant 0 : index
    %c0_37 = arith.constant 0 : index
    %62 = vector.load %arg6[%c0_36, %c0_37] : memref<128x128xf32, #tpu.memory_space<vmem>>, vector<128x128xf32>
    %cst_38 = arith.constant dense<0.000000e+00> : vector<8x128xf32>
    %63 = tpu.matmul %59, %62, %cst_38 {dimension_numbers = #tpu.dot_dimension_numbers<[1], [0], [0], [1], [0, 0, 1, 1], [], []>} : vector<8x128xf32>, vector<128x128xf32>, vector<8x128xf32> -> vector<8x128xf32>
    %64 = arith.addf %61, %63 : vector<8x128xf32>
    %65 = math.tanh %64 : vector<8x128xf32>
    %c3_i32 = arith.constant 3 : i32
    %66 = arith.index_cast %c3_i32 : i32 to index
    %c0_39 = arith.constant 0 : index
    %c0_40 = arith.constant 0 : index
    %67 = vector.load %arg2[%66, %c0_39, %c0_40] : memref<8x8x128xf32, #tpu.memory_space<vmem>>, vector<1x8x128xf32>
    %68 = vector.shape_cast %67 : vector<1x8x128xf32> to vector<8x128xf32>
    %69 = vector.extract_strided_slice %68 {offsets = [0, 127], sizes = [8, 1], strides = [1, 1]} : vector<8x128xf32> to vector<8x1xf32>
    %c0_41 = arith.constant 0 : index
    %c0_42 = arith.constant 0 : index
    %70 = vector.load %arg4[%c0_41, %c0_42] : memref<128x256xf32, #tpu.memory_space<vmem>>, vector<128x256xf32>
    %cst_43 = arith.constant dense<0.000000e+00> : vector<8x256xf32>
    %71 = tpu.matmul %65, %70, %cst_43 {dimension_numbers = #tpu.dot_dimension_numbers<[1], [0], [0], [1], [0, 0, 1, 1], [], []>} : vector<8x128xf32>, vector<128x256xf32>, vector<8x256xf32> -> vector<8x256xf32>
    %c0_44 = arith.constant 0 : index
    %c0_45 = arith.constant 0 : index
    %72 = vector.load %arg5[%c0_44, %c0_45] : memref<128x128xf32, #tpu.memory_space<vmem>>, vector<128x128xf32>
    %cst_46 = arith.constant dense<0.000000e+00> : vector<8x128xf32>
    %73 = tpu.matmul %59, %72, %cst_46 {dimension_numbers = #tpu.dot_dimension_numbers<[1], [0], [0], [1], [0, 0, 1, 1], [], []>} : vector<8x128xf32>, vector<128x128xf32>, vector<8x128xf32> -> vector<8x128xf32>
    %74 = vector.extract_strided_slice %71 {offsets = [0, 0], sizes = [8, 128], strides = [1, 1]} : vector<8x256xf32> to vector<8x128xf32>
    %75 = arith.addf %73, %74 : vector<8x128xf32>
    %76 = vector.broadcast %69 : vector<8x1xf32> to vector<8x128xf32>
    %77 = vector.broadcast %3 : vector<1x128xf32> to vector<8x128xf32>
    %78 = arith.mulf %76, %77 : vector<8x128xf32>
    %79 = arith.addf %75, %78 : vector<8x128xf32>
    %80 = vector.extract_strided_slice %71 {offsets = [0, 128], sizes = [8, 128], strides = [1, 1]} : vector<8x256xf32> to vector<8x128xf32>
    %81 = arith.addf %68, %80 : vector<8x128xf32>
    %c0_47 = arith.constant 0 : index
    %c0_48 = arith.constant 0 : index
    %82 = vector.load %arg6[%c0_47, %c0_48] : memref<128x128xf32, #tpu.memory_space<vmem>>, vector<128x128xf32>
    %cst_49 = arith.constant dense<0.000000e+00> : vector<8x128xf32>
    %83 = tpu.matmul %79, %82, %cst_49 {dimension_numbers = #tpu.dot_dimension_numbers<[1], [0], [0], [1], [0, 0, 1, 1], [], []>} : vector<8x128xf32>, vector<128x128xf32>, vector<8x128xf32> -> vector<8x128xf32>
    %84 = arith.addf %81, %83 : vector<8x128xf32>
    %85 = math.tanh %84 : vector<8x128xf32>
    %c4_i32 = arith.constant 4 : i32
    %86 = arith.index_cast %c4_i32 : i32 to index
    %c0_50 = arith.constant 0 : index
    %c0_51 = arith.constant 0 : index
    %87 = vector.load %arg2[%86, %c0_50, %c0_51] : memref<8x8x128xf32, #tpu.memory_space<vmem>>, vector<1x8x128xf32>
    %88 = vector.shape_cast %87 : vector<1x8x128xf32> to vector<8x128xf32>
    %89 = vector.extract_strided_slice %88 {offsets = [0, 127], sizes = [8, 1], strides = [1, 1]} : vector<8x128xf32> to vector<8x1xf32>
    %c0_52 = arith.constant 0 : index
    %c0_53 = arith.constant 0 : index
    %90 = vector.load %arg4[%c0_52, %c0_53] : memref<128x256xf32, #tpu.memory_space<vmem>>, vector<128x256xf32>
    %cst_54 = arith.constant dense<0.000000e+00> : vector<8x256xf32>
    %91 = tpu.matmul %85, %90, %cst_54 {dimension_numbers = #tpu.dot_dimension_numbers<[1], [0], [0], [1], [0, 0, 1, 1], [], []>} : vector<8x128xf32>, vector<128x256xf32>, vector<8x256xf32> -> vector<8x256xf32>
    %c0_55 = arith.constant 0 : index
    %c0_56 = arith.constant 0 : index
    %92 = vector.load %arg5[%c0_55, %c0_56] : memref<128x128xf32, #tpu.memory_space<vmem>>, vector<128x128xf32>
    %cst_57 = arith.constant dense<0.000000e+00> : vector<8x128xf32>
    %93 = tpu.matmul %79, %92, %cst_57 {dimension_numbers = #tpu.dot_dimension_numbers<[1], [0], [0], [1], [0, 0, 1, 1], [], []>} : vector<8x128xf32>, vector<128x128xf32>, vector<8x128xf32> -> vector<8x128xf32>
    %94 = vector.extract_strided_slice %91 {offsets = [0, 0], sizes = [8, 128], strides = [1, 1]} : vector<8x256xf32> to vector<8x128xf32>
    %95 = arith.addf %93, %94 : vector<8x128xf32>
    %96 = vector.broadcast %89 : vector<8x1xf32> to vector<8x128xf32>
    %97 = vector.broadcast %3 : vector<1x128xf32> to vector<8x128xf32>
    %98 = arith.mulf %96, %97 : vector<8x128xf32>
    %99 = arith.addf %95, %98 : vector<8x128xf32>
    %100 = vector.extract_strided_slice %91 {offsets = [0, 128], sizes = [8, 128], strides = [1, 1]} : vector<8x256xf32> to vector<8x128xf32>
    %101 = arith.addf %88, %100 : vector<8x128xf32>
    %c0_58 = arith.constant 0 : index
    %c0_59 = arith.constant 0 : index
    %102 = vector.load %arg6[%c0_58, %c0_59] : memref<128x128xf32, #tpu.memory_space<vmem>>, vector<128x128xf32>
    %cst_60 = arith.constant dense<0.000000e+00> : vector<8x128xf32>
    %103 = tpu.matmul %99, %102, %cst_60 {dimension_numbers = #tpu.dot_dimension_numbers<[1], [0], [0], [1], [0, 0, 1, 1], [], []>} : vector<8x128xf32>, vector<128x128xf32>, vector<8x128xf32> -> vector<8x128xf32>
    %104 = arith.addf %101, %103 : vector<8x128xf32>
    %105 = math.tanh %104 : vector<8x128xf32>
    %c5_i32 = arith.constant 5 : i32
    %106 = arith.index_cast %c5_i32 : i32 to index
    %c0_61 = arith.constant 0 : index
    %c0_62 = arith.constant 0 : index
    %107 = vector.load %arg2[%106, %c0_61, %c0_62] : memref<8x8x128xf32, #tpu.memory_space<vmem>>, vector<1x8x128xf32>
    %108 = vector.shape_cast %107 : vector<1x8x128xf32> to vector<8x128xf32>
    %109 = vector.extract_strided_slice %108 {offsets = [0, 127], sizes = [8, 1], strides = [1, 1]} : vector<8x128xf32> to vector<8x1xf32>
    %c0_63 = arith.constant 0 : index
    %c0_64 = arith.constant 0 : index
    %110 = vector.load %arg4[%c0_63, %c0_64] : memref<128x256xf32, #tpu.memory_space<vmem>>, vector<128x256xf32>
    %cst_65 = arith.constant dense<0.000000e+00> : vector<8x256xf32>
    %111 = tpu.matmul %105, %110, %cst_65 {dimension_numbers = #tpu.dot_dimension_numbers<[1], [0], [0], [1], [0, 0, 1, 1], [], []>} : vector<8x128xf32>, vector<128x256xf32>, vector<8x256xf32> -> vector<8x256xf32>
    %c0_66 = arith.constant 0 : index
    %c0_67 = arith.constant 0 : index
    %112 = vector.load %arg5[%c0_66, %c0_67] : memref<128x128xf32, #tpu.memory_space<vmem>>, vector<128x128xf32>
    %cst_68 = arith.constant dense<0.000000e+00> : vector<8x128xf32>
    %113 = tpu.matmul %99, %112, %cst_68 {dimension_numbers = #tpu.dot_dimension_numbers<[1], [0], [0], [1], [0, 0, 1, 1], [], []>} : vector<8x128xf32>, vector<128x128xf32>, vector<8x128xf32> -> vector<8x128xf32>
    %114 = vector.extract_strided_slice %111 {offsets = [0, 0], sizes = [8, 128], strides = [1, 1]} : vector<8x256xf32> to vector<8x128xf32>
    %115 = arith.addf %113, %114 : vector<8x128xf32>
    %116 = vector.broadcast %109 : vector<8x1xf32> to vector<8x128xf32>
    %117 = vector.broadcast %3 : vector<1x128xf32> to vector<8x128xf32>
    %118 = arith.mulf %116, %117 : vector<8x128xf32>
    %119 = arith.addf %115, %118 : vector<8x128xf32>
    %120 = vector.extract_strided_slice %111 {offsets = [0, 128], sizes = [8, 128], strides = [1, 1]} : vector<8x256xf32> to vector<8x128xf32>
    %121 = arith.addf %108, %120 : vector<8x128xf32>
    %c0_69 = arith.constant 0 : index
    %c0_70 = arith.constant 0 : index
    %122 = vector.load %arg6[%c0_69, %c0_70] : memref<128x128xf32, #tpu.memory_space<vmem>>, vector<128x128xf32>
    %cst_71 = arith.constant dense<0.000000e+00> : vector<8x128xf32>
    %123 = tpu.matmul %119, %122, %cst_71 {dimension_numbers = #tpu.dot_dimension_numbers<[1], [0], [0], [1], [0, 0, 1, 1], [], []>} : vector<8x128xf32>, vector<128x128xf32>, vector<8x128xf32> -> vector<8x128xf32>
    %124 = arith.addf %121, %123 : vector<8x128xf32>
    %125 = math.tanh %124 : vector<8x128xf32>
    %c6_i32 = arith.constant 6 : i32
    %126 = arith.index_cast %c6_i32 : i32 to index
    %c0_72 = arith.constant 0 : index
    %c0_73 = arith.constant 0 : index
    %127 = vector.load %arg2[%126, %c0_72, %c0_73] : memref<8x8x128xf32, #tpu.memory_space<vmem>>, vector<1x8x128xf32>
    %128 = vector.shape_cast %127 : vector<1x8x128xf32> to vector<8x128xf32>
    %129 = vector.extract_strided_slice %128 {offsets = [0, 127], sizes = [8, 1], strides = [1, 1]} : vector<8x128xf32> to vector<8x1xf32>
    %c0_74 = arith.constant 0 : index
    %c0_75 = arith.constant 0 : index
    %130 = vector.load %arg4[%c0_74, %c0_75] : memref<128x256xf32, #tpu.memory_space<vmem>>, vector<128x256xf32>
    %cst_76 = arith.constant dense<0.000000e+00> : vector<8x256xf32>
    %131 = tpu.matmul %125, %130, %cst_76 {dimension_numbers = #tpu.dot_dimension_numbers<[1], [0], [0], [1], [0, 0, 1, 1], [], []>} : vector<8x128xf32>, vector<128x256xf32>, vector<8x256xf32> -> vector<8x256xf32>
    %c0_77 = arith.constant 0 : index
    %c0_78 = arith.constant 0 : index
    %132 = vector.load %arg5[%c0_77, %c0_78] : memref<128x128xf32, #tpu.memory_space<vmem>>, vector<128x128xf32>
    %cst_79 = arith.constant dense<0.000000e+00> : vector<8x128xf32>
    %133 = tpu.matmul %119, %132, %cst_79 {dimension_numbers = #tpu.dot_dimension_numbers<[1], [0], [0], [1], [0, 0, 1, 1], [], []>} : vector<8x128xf32>, vector<128x128xf32>, vector<8x128xf32> -> vector<8x128xf32>
    %134 = vector.extract_strided_slice %131 {offsets = [0, 0], sizes = [8, 128], strides = [1, 1]} : vector<8x256xf32> to vector<8x128xf32>
    %135 = arith.addf %133, %134 : vector<8x128xf32>
    %136 = vector.broadcast %129 : vector<8x1xf32> to vector<8x128xf32>
    %137 = vector.broadcast %3 : vector<1x128xf32> to vector<8x128xf32>
    %138 = arith.mulf %136, %137 : vector<8x128xf32>
    %139 = arith.addf %135, %138 : vector<8x128xf32>
    %140 = vector.extract_strided_slice %131 {offsets = [0, 128], sizes = [8, 128], strides = [1, 1]} : vector<8x256xf32> to vector<8x128xf32>
    %141 = arith.addf %128, %140 : vector<8x128xf32>
    %c0_80 = arith.constant 0 : index
    %c0_81 = arith.constant 0 : index
    %142 = vector.load %arg6[%c0_80, %c0_81] : memref<128x128xf32, #tpu.memory_space<vmem>>, vector<128x128xf32>
    %cst_82 = arith.constant dense<0.000000e+00> : vector<8x128xf32>
    %143 = tpu.matmul %139, %142, %cst_82 {dimension_numbers = #tpu.dot_dimension_numbers<[1], [0], [0], [1], [0, 0, 1, 1], [], []>} : vector<8x128xf32>, vector<128x128xf32>, vector<8x128xf32> -> vector<8x128xf32>
    %144 = arith.addf %141, %143 : vector<8x128xf32>
    %145 = math.tanh %144 : vector<8x128xf32>
    %c7_i32 = arith.constant 7 : i32
    %146 = arith.index_cast %c7_i32 : i32 to index
    %c0_83 = arith.constant 0 : index
    %c0_84 = arith.constant 0 : index
    %147 = vector.load %arg2[%146, %c0_83, %c0_84] : memref<8x8x128xf32, #tpu.memory_space<vmem>>, vector<1x8x128xf32>
    %148 = vector.shape_cast %147 : vector<1x8x128xf32> to vector<8x128xf32>
    %149 = vector.extract_strided_slice %148 {offsets = [0, 127], sizes = [8, 1], strides = [1, 1]} : vector<8x128xf32> to vector<8x1xf32>
    %c0_85 = arith.constant 0 : index
    %c0_86 = arith.constant 0 : index
    %150 = vector.load %arg4[%c0_85, %c0_86] : memref<128x256xf32, #tpu.memory_space<vmem>>, vector<128x256xf32>
    %cst_87 = arith.constant dense<0.000000e+00> : vector<8x256xf32>
    %151 = tpu.matmul %145, %150, %cst_87 {dimension_numbers = #tpu.dot_dimension_numbers<[1], [0], [0], [1], [0, 0, 1, 1], [], []>} : vector<8x128xf32>, vector<128x256xf32>, vector<8x256xf32> -> vector<8x256xf32>
    %c0_88 = arith.constant 0 : index
    %c0_89 = arith.constant 0 : index
    %152 = vector.load %arg5[%c0_88, %c0_89] : memref<128x128xf32, #tpu.memory_space<vmem>>, vector<128x128xf32>
    %cst_90 = arith.constant dense<0.000000e+00> : vector<8x128xf32>
    %153 = tpu.matmul %139, %152, %cst_90 {dimension_numbers = #tpu.dot_dimension_numbers<[1], [0], [0], [1], [0, 0, 1, 1], [], []>} : vector<8x128xf32>, vector<128x128xf32>, vector<8x128xf32> -> vector<8x128xf32>
    %154 = vector.extract_strided_slice %151 {offsets = [0, 0], sizes = [8, 128], strides = [1, 1]} : vector<8x256xf32> to vector<8x128xf32>
    %155 = arith.addf %153, %154 : vector<8x128xf32>
    %156 = vector.broadcast %149 : vector<8x1xf32> to vector<8x128xf32>
    %157 = vector.broadcast %3 : vector<1x128xf32> to vector<8x128xf32>
    %158 = arith.mulf %156, %157 : vector<8x128xf32>
    %159 = arith.addf %155, %158 : vector<8x128xf32>
    %160 = vector.extract_strided_slice %151 {offsets = [0, 128], sizes = [8, 128], strides = [1, 1]} : vector<8x256xf32> to vector<8x128xf32>
    %161 = arith.addf %148, %160 : vector<8x128xf32>
    %c0_91 = arith.constant 0 : index
    %c0_92 = arith.constant 0 : index
    %162 = vector.load %arg6[%c0_91, %c0_92] : memref<128x128xf32, #tpu.memory_space<vmem>>, vector<128x128xf32>
    %cst_93 = arith.constant dense<0.000000e+00> : vector<8x128xf32>
    %163 = tpu.matmul %159, %162, %cst_93 {dimension_numbers = #tpu.dot_dimension_numbers<[1], [0], [0], [1], [0, 0, 1, 1], [], []>} : vector<8x128xf32>, vector<128x128xf32>, vector<8x128xf32> -> vector<8x128xf32>
    %164 = arith.addf %161, %163 : vector<8x128xf32>
    %165 = math.tanh %164 : vector<8x128xf32>
    %c8_i32 = arith.constant 8 : i32
    %c0_94 = arith.constant 0 : index
    %c0_95 = arith.constant 0 : index
    %166 = vector.load %arg8[%c0_94, %c0_95] : memref<8x128xf32, #tpu.memory_space<vmem>>, vector<8x128xf32>
    tpu.vector_store %arg8[%c0_94, %c0_95], %165 {strides = array<i32>} : memref<8x128xf32, #tpu.memory_space<vmem>>, vector<8x128xf32>,
    %c0_96 = arith.constant 0 : index
    %c0_97 = arith.constant 0 : index
    %167 = vector.load %arg9[%c0_96, %c0_97] : memref<8x128xf32, #tpu.memory_space<vmem>>, vector<8x128xf32>
    tpu.vector_store %arg9[%c0_96, %c0_97], %159 {strides = array<i32>} : memref<8x128xf32, #tpu.memory_space<vmem>>, vector<8x128xf32>,
    %c0_i32_98 = arith.constant 0 : i32
    %168 = arith.cmpi eq, %arg1, %c0_i32_98 : i32
    %169 = arith.extui %168 : i1 to i32
    %c0_i32_99 = arith.constant 0 : i32
    %170 = arith.cmpi ne, %169, %c0_i32_99 : i32
    scf.if %170 {
      %c0_100 = arith.constant 0 : index
      %c0_101 = arith.constant 0 : index
      %171 = vector.load %arg7[%c0_100, %c0_101] : memref<8x128xf32, #tpu.memory_space<vmem>>, vector<8x128xf32>
      tpu.vector_store %arg7[%c0_100, %c0_101], %165 {strides = array<i32>} : memref<8x128xf32, #tpu.memory_space<vmem>>, vector<8x128xf32>,
    } else {
    }
    return
  }
  func.func @transform_0(%arg0: i32, %arg1: i32) -> (i32, i32, i32) {
    %c0_i32 = arith.constant 0 : i32
    %c0_i32_0 = arith.constant 0 : i32
    return %arg1, %arg0, %c0_i32 : i32, i32, i32
  }
  func.func @transform_1(%arg0: i32, %arg1: i32) -> (i32, i32) {
    %c0_i32 = arith.constant 0 : i32
    %c0_i32_0 = arith.constant 0 : i32
    %c0_i32_1 = arith.constant 0 : i32
    return %c0_i32, %c0_i32_0 : i32, i32
  }
  func.func @transform_2(%arg0: i32, %arg1: i32) -> (i32, i32) {
    %c0_i32 = arith.constant 0 : i32
    %c0_i32_0 = arith.constant 0 : i32
    %c0_i32_1 = arith.constant 0 : i32
    return %c0_i32, %c0_i32_0 : i32, i32
  }
  func.func @transform_3(%arg0: i32, %arg1: i32) -> (i32, i32) {
    %c0_i32 = arith.constant 0 : i32
    %c0_i32_0 = arith.constant 0 : i32
    %c0_i32_1 = arith.constant 0 : i32
    return %c0_i32, %c0_i32_0 : i32, i32
  }
  func.func @transform_4(%arg0: i32, %arg1: i32) -> (i32, i32) {
    %c0_i32 = arith.constant 0 : i32
    %c0_i32_0 = arith.constant 0 : i32
    %c0_i32_1 = arith.constant 0 : i32
    return %c0_i32, %c0_i32_0 : i32, i32
  }
  func.func @transform_5(%arg0: i32, %arg1: i32) -> (i32, i32) {
    %c0_i32 = arith.constant 0 : i32
    %c0_i32_0 = arith.constant 0 : i32
    return %arg0, %c0_i32 : i32, i32
  }
}

</mosaic_0001>

<llo_original>
// kernel: tpu_custom_call.1
$region0: #{tpu_custom_call.1}
  #allocation0 [shape = 'u32[]', space=smem, size = 0x4, offset = 0x4, fixed_abs, tag = 'smem constant byte address 0x4 - core index']
  #allocation1 [shape = 'u32[72,128]{1,0:T(1,128)}', space=vmem, size = 0x9000, scoped, tag = 'internal scratch']
  #allocation2 [shape = 'f32[8,128]{1,0:T(8,128)}', space=vmem, size = 0x1000, scoped, tag = 'scratch operand']
  #allocation3 [shape = 'f32[8,128]{1,0:T(8,128)}', space=vmem, size = 0x1000, scoped, tag = 'scratch operand']
  %s0 = inlined_call_operand.hbm [shape: f32[8,8,128], index: 0, kind: input, shape index: {}]
  %s1 = inlined_call_operand.hbm [shape: f32[1,128], index: 1, kind: input, shape index: {}]
  %s2 = inlined_call_operand.hbm [shape: f32[128,256], index: 2, kind: input, shape index: {}]
  %s3 = inlined_call_operand.hbm [shape: f32[128,128], index: 3, kind: input, shape index: {}]
  %s4 = inlined_call_operand.hbm [shape: f32[128,128], index: 4, kind: input, shape index: {}]
  %s5 = inlined_call_operand.hbm [shape: f32[8,128], index: 5, kind: output, shape index: {}]
  %s6 = sld [smem:[#allocation0]]
  $region58: #{tpu_custom_call.1} parent=0
    _
  %s8 = ssub.s32 1, %s6
  %s9 = scalar_select 0, %s8, %s6
  $region1: #{tpu_custom_call.1} parent=0
    #allocation4 [shape = 'u8[32768]{0}', space=vmem, size = 0x8000, scoped, tag = 'input window, operand 0, single buffered']
    #allocation5 [shape = 's32[1]{0}', space=sflag, size = 0x4, scoped, tag = 'scoped memory for tpu_custom_call.1']
    #allocation6 [shape = 's32[1]{0}', space=sflag, size = 0x4, scoped, tag = 'scoped memory for tpu_custom_call.1']
    #allocation7 [shape = 'u8[512]{0}', space=vmem, size = 0x400, scoped, tag = 'input window, operand 1, single buffered']
    #allocation8 [shape = 's32[1]{0}', space=sflag, size = 0x4, scoped, tag = 'scoped memory for tpu_custom_call.1']
    #allocation9 [shape = 'u8[131072]{0}', space=vmem, size = 0x20000, scoped, tag = 'input window, operand 2, single buffered']
    #allocation10 [shape = 'u8[65536]{0}', space=vmem, size = 0x10000, scoped, tag = 'input window, operand 3, single buffered']
    #allocation11 [shape = 's32[1]{0}', space=sflag, size = 0x4, scoped, tag = 'scoped memory for tpu_custom_call.1']
    #allocation12 [shape = 'u8[65536]{0}', space=vmem, size = 0x10000, scoped, tag = 'input window, operand 4, single buffered']
    #allocation13 [shape = 'u8[4096]{0}', space=vmem, size = 0x1000, scoped, tag = 'output window, operand 0, single buffered']
    %10 = vsyncpa [#allocation5], 0
    %11 = vsyncpa [#allocation8], 0
    %12 = vsyncpa [#allocation11], 0
    %13 = vsyncpa [#allocation6], 0
    // Predicated region
    $region2: #{tpu_custom_call.1} parent=1 // pred_check
      _
    $region3: #{tpu_custom_call.1} parent=1 // pred_check_branch
      %15 = sbr.rel (0) target = $region5
    $region4: #{tpu_custom_call.1} parent=1 // pred_region
      %17 = vsyncadd [#allocation5], 0
      %s18 = sshll.u32 %s0, 4
      %s19 = int_to_ptr.hbm [resolvable:$true] %s18
      %s20 = sshll.u32 [#allocation4], 4
      %s21 = int_to_ptr.vmem [resolvable:$true] %s20
      %26 = dma.hbm_to_vmem [thread:$0]  %s19, 1024, %s21, [#allocation5], 128, 128, 8
    $region5: #{tpu_custom_call.1} parent=1 // pred_fallthru
      _
    // Predicated region
    $region6: #{tpu_custom_call.1} parent=1 // pred_check
      _
    $region7: #{tpu_custom_call.1} parent=1 // pred_check_branch
      %28 = sbr.rel (0) target = $region9
    $region8: #{tpu_custom_call.1} parent=1 // pred_region
      %30 = vsyncadd [#allocation8], 0
      %s32 = sshll.u32 %s1, 4
      %s33 = int_to_ptr.hbm [resolvable:$true] %s32
      %s34 = sshll.u32 [#allocation7], 4
      %s35 = int_to_ptr.vmem [resolvable:$true] %s34
      %37 = dma.hbm_to_vmem [thread:$0]  %s33, 16, %s35, [#allocation8]
    $region9: #{tpu_custom_call.1} parent=1 // pred_fallthru
      _
    // Predicated region
    $region10: #{tpu_custom_call.1} parent=1 // pred_check
      _
    $region11: #{tpu_custom_call.1} parent=1 // pred_check_branch
      %39 = sbr.rel (0) target = $region13
    $region12: #{tpu_custom_call.1} parent=1 // pred_region
      %41 = vsyncadd [#allocation8], 0
      %s42 = sshll.u32 %s2, 4
      %s43 = int_to_ptr.hbm [resolvable:$true] %s42
      %s44 = sshll.u32 [#allocation9], 4
      %s45 = int_to_ptr.vmem [resolvable:$true] %s44
      %50 = dma.hbm_to_vmem [thread:$0]  %s43, 4096, %s45, [#allocation8], 256, 256, 16
    $region13: #{tpu_custom_call.1} parent=1 // pred_fallthru
      _
    // Predicated region
    $region14: #{tpu_custom_call.1} parent=1 // pred_check
      _
    $region15: #{tpu_custom_call.1} parent=1 // pred_check_branch
      %52 = sbr.rel (0) target = $region17
    $region16: #{tpu_custom_call.1} parent=1 // pred_region
      %54 = vsyncadd [#allocation11], 0
      %s55 = sshll.u32 %s3, 4
      %s56 = int_to_ptr.hbm [resolvable:$true] %s55
      %s57 = sshll.u32 [#allocation10], 4
      %s58 = int_to_ptr.vmem [resolvable:$true] %s57
      %63 = dma.hbm_to_vmem [thread:$0]  %s56, 2048, %s58, [#allocation11], 128, 128, 8
    $region17: #{tpu_custom_call.1} parent=1 // pred_fallthru
      _
    // Predicated region
    $region18: #{tpu_custom_call.1} parent=1 // pred_check
      _
    $region19: #{tpu_custom_call.1} parent=1 // pred_check_branch
      %65 = sbr.rel (0) target = $region21
    $region20: #{tpu_custom_call.1} parent=1 // pred_region
      %67 = vsyncadd [#allocation11], 0
      %s68 = sshll.u32 %s4, 4
      %s69 = int_to_ptr.hbm [resolvable:$true] %s68
      %s70 = sshll.u32 [#allocation12], 4
      %s71 = int_to_ptr.vmem [resolvable:$true] %s70
      %76 = dma.hbm_to_vmem [thread:$0]  %s69, 2048, %s71, [#allocation11], 128, 128, 8
    $region21: #{tpu_custom_call.1} parent=1 // pred_fallthru
      _
    // Predicated region
    $region22: #{tpu_custom_call.1} parent=1 // pred_check
      _
    $region23: #{tpu_custom_call.1} parent=1 // pred_check_branch
      %78 = sbr.rel (0) target = $region25
    $region24: #{tpu_custom_call.1} parent=1 // pred_region
      %80 = dma.done [#allocation5], 1024
    $region25: #{tpu_custom_call.1} parent=1 // pred_fallthru
      _
    // Predicated region
    $region26: #{tpu_custom_call.1} parent=1 // pred_check
      _
    $region27: #{tpu_custom_call.1} parent=1 // pred_check_branch
      %82 = sbr.rel (0) target = $region29
    $region28: #{tpu_custom_call.1} parent=1 // pred_region
      %84 = dma.done [#allocation8], 16
    $region29: #{tpu_custom_call.1} parent=1 // pred_fallthru
      _
    // Predicated region
    $region30: #{tpu_custom_call.1} parent=1 // pred_check
      _
    $region31: #{tpu_custom_call.1} parent=1 // pred_check_branch
      %86 = sbr.rel (0) target = $region33
    $region32: #{tpu_custom_call.1} parent=1 // pred_region
      %88 = dma.done [#allocation8], 4096
    $region33: #{tpu_custom_call.1} parent=1 // pred_fallthru
      _
    // Predicated region
    $region34: #{tpu_custom_call.1} parent=1 // pred_check
      _
    $region35: #{tpu_custom_call.1} parent=1 // pred_check_branch
      %90 = sbr.rel (0) target = $region37
    $region36: #{tpu_custom_call.1} parent=1 // pred_region
      %92 = dma.done [#allocation11], 2048
    $region37: #{tpu_custom_call.1} parent=1 // pred_fallthru
      _
    // Predicated region
    $region38: #{tpu_custom_call.1} parent=1 // pred_check
      _
    $region39: #{tpu_custom_call.1} parent=1 // pred_check_branch
      %94 = sbr.rel (0) target = $region41
    $region40: #{tpu_custom_call.1} parent=1 // pred_region
      %96 = dma.done [#allocation11], 2048
    $region41: #{tpu_custom_call.1} parent=1 // pred_fallthru
      _
    %p97 = scmp.eq.s32.totalorder 0, 0
    // Predicated region
    $region42: #{tpu_custom_call.1} parent=1 // pred_check
      %p98 = pneg %p97
    $region43: #{tpu_custom_call.1} parent=1 // pred_check_branch
      %100 = sbr.rel (%p98) target = $region45
    $region44: #{tpu_custom_call.1} parent=1 // pred_region
      %101 = vst [vmem:[#allocation2] sm:$0xff] 0.0
      %102 = vst [vmem:[#allocation3] sm:$0xff] 0.0
    $region45: #{tpu_custom_call.1} parent=1 // pred_fallthru
      _
    %v103 = vld [vmem:[#allocation7] sm:$0x1]
    %v104 = vld [vmem:[#allocation2] sm:$0xff]
    %v105 = vld [vmem:[#allocation3] sm:$0xff]
    %v106 = vld [vmem:[#allocation4] sm:$0xff]
    %v107 = vld [vmem:[#allocation9] sm:$0xff]
    %v108 = vld [vmem:[#allocation9 + $0x8] sm:$0xff]
    %v109 = vld [vmem:[#allocation9 + $0x10] sm:$0xff]
    %v110 = vld [vmem:[#allocation9 + $0x18] sm:$0xff]
    %v111 = vld [vmem:[#allocation9 + $0x20] sm:$0xff]
    %v112 = vld [vmem:[#allocation9 + $0x28] sm:$0xff]
    %v113 = vld [vmem:[#allocation9 + $0x30] sm:$0xff]
    %v114 = vld [vmem:[#allocation9 + $0x38] sm:$0xff]
    %v115 = vld [vmem:[#allocation9 + $0x40] sm:$0xff]
    %v116 = vld [vmem:[#allocation9 + $0x48] sm:$0xff]
    %v117 = vld [vmem:[#allocation9 + $0x50] sm:$0xff]
    %v118 = vld [vmem:[#allocation9 + $0x58] sm:$0xff]
    %v119 = vld [vmem:[#allocation9 + $0x60] sm:$0xff]
    %v120 = vld [vmem:[#allocation9 + $0x68] sm:$0xff]
    %v121 = vld [vmem:[#allocation9 + $0x70] sm:$0xff]
    %v122 = vld [vmem:[#allocation9 + $0x78] sm:$0xff]
    %v123 = vld [vmem:[#allocation9 + $0x80] sm:$0xff]
    %v124 = vld [vmem:[#allocation9 + $0x88] sm:$0xff]
    %v125 = vld [vmem:[#allocation9 + $0x90] sm:$0xff]
    %v126 = vld [vmem:[#allocation9 + $0x98] sm:$0xff]
    %v127 = vld [vmem:[#allocation9 + $0xa0] sm:$0xff]
    %v128 = vld [vmem:[#allocation9 + $0xa8] sm:$0xff]
    %v129 = vld [vmem:[#allocation9 + $0xb0] sm:$0xff]
    %v130 = vld [vmem:[#allocation9 + $0xb8] sm:$0xff]
    %v131 = vld [vmem:[#allocation9 + $0xc0] sm:$0xff]
    %v132 = vld [vmem:[#allocation9 + $0xc8] sm:$0xff]
    %v133 = vld [vmem:[#allocation9 + $0xd0] sm:$0xff]
    %v134 = vld [vmem:[#allocation9 + $0xd8] sm:$0xff]
    %v135 = vld [vmem:[#allocation9 + $0xe0] sm:$0xff]
    %v136 = vld [vmem:[#allocation9 + $0xe8] sm:$0xff]
    %v137 = vld [vmem:[#allocation9 + $0xf0] sm:$0xff]
    %v138 = vld [vmem:[#allocation9 + $0xf8] sm:$0xff]
    %139 = vmatpush.msra.mxu0 %v137
    %140 = vmatpush.msra.mxu0 %v135
    %141 = vmatpush.msra.mxu0 %v133
    %142 = vmatpush.msra.mxu0 %v131
    %143 = vmatpush.msra.mxu0 %v129
    %144 = vmatpush.msra.mxu0 %v127
    %145 = vmatpush.msra.mxu0 %v125
    %146 = vmatpush.msra.mxu0 %v123
    %147 = vmatpush.msra.mxu0 %v121
    %148 = vmatpush.msra.mxu0 %v119
    %149 = vmatpush.msra.mxu0 %v117
    %150 = vmatpush.msra.mxu0 %v115
    %151 = vmatpush.msra.mxu0 %v113
    %152 = vmatpush.msra.mxu0 %v111
    %153 = vmatpush.msra.mxu0 %v109
    %154 = vmatpush.msra.mxu0 %v107
    %155 = vmatmul.f32.gmra.mxu0 %v104
    %v156 = vpop.f32.mrf.mxu0
    %v157 = vadd.f32 0.0, %v156
    %158 = vdwg.mxu0
    %159 = vmatpush.msra.mxu0 %v138
    %160 = vmatpush.msra.mxu0 %v136
    %161 = vmatpush.msra.mxu0 %v134
    %162 = vmatpush.msra.mxu0 %v132
    %163 = vmatpush.msra.mxu0 %v130
    %164 = vmatpush.msra.mxu0 %v128
    %165 = vmatpush.msra.mxu0 %v126
    %166 = vmatpush.msra.mxu0 %v124
    %167 = vmatpush.msra.mxu0 %v122
    %168 = vmatpush.msra.mxu0 %v120
    %169 = vmatpush.msra.mxu0 %v118
    %170 = vmatpush.msra.mxu0 %v116
    %171 = vmatpush.msra.mxu0 %v114
    %172 = vmatpush.msra.mxu0 %v112
    %173 = vmatpush.msra.mxu0 %v110
    %174 = vmatpush.msra.mxu0 %v108
    %175 = vmatmul.f32.gmra.mxu0 %v104
    %v176 = vpop.f32.mrf.mxu0
    %v177 = vadd.f32 0.0, %v176
    %178 = vdwg.mxu0
    %v179 = vld [vmem:[#allocation10] sm:$0xff]
    %v180 = vld [vmem:[#allocation10 + $0x8] sm:$0xff]
    %v181 = vld [vmem:[#allocation10 + $0x10] sm:$0xff]
    %v182 = vld [vmem:[#allocation10 + $0x18] sm:$0xff]
    %v183 = vld [vmem:[#allocation10 + $0x20] sm:$0xff]
    %v184 = vld [vmem:[#allocation10 + $0x28] sm:$0xff]
    %v185 = vld [vmem:[#allocation10 + $0x30] sm:$0xff]
    %v186 = vld [vmem:[#allocation10 + $0x38] sm:$0xff]
    %v187 = vld [vmem:[#allocation10 + $0x40] sm:$0xff]
    %v188 = vld [vmem:[#allocation10 + $0x48] sm:$0xff]
    %v189 = vld [vmem:[#allocation10 + $0x50] sm:$0xff]
    %v190 = vld [vmem:[#allocation10 + $0x58] sm:$0xff]
    %v191 = vld [vmem:[#allocation10 + $0x60] sm:$0xff]
    %v192 = vld [vmem:[#allocation10 + $0x68] sm:$0xff]
    %v193 = vld [vmem:[#allocation10 + $0x70] sm:$0xff]
    %v194 = vld [vmem:[#allocation10 + $0x78] sm:$0xff]
    %195 = vmatpush.msra.mxu0 %v194
    %196 = vmatpush.msra.mxu0 %v193
    %197 = vmatpush.msra.mxu0 %v192
    %198 = vmatpush.msra.mxu0 %v191
    %199 = vmatpush.msra.mxu0 %v190
    %200 = vmatpush.msra.mxu0 %v189
    %201 = vmatpush.msra.mxu0 %v188
    %202 = vmatpush.msra.mxu0 %v187
    %203 = vmatpush.msra.mxu0 %v186
    %204 = vmatpush.msra.mxu0 %v185
    %205 = vmatpush.msra.mxu0 %v184
    %206 = vmatpush.msra.mxu0 %v183
    %207 = vmatpush.msra.mxu0 %v182
    %208 = vmatpush.msra.mxu0 %v181
    %209 = vmatpush.msra.mxu0 %v180
    %210 = vmatpush.msra.mxu0 %v179
    %211 = vmatmul.f32.gmra.mxu0 %v105
    %v212 = vpop.f32.mrf.mxu0
    %v213 = vadd.f32 %v157, %v212
    %214 = vdwg.mxu0
    %216 = vset.pattern.permute.xlu0 127
    %217 = vperm.xlu0 %216, %v106
    %v218 = vpop.permute.xlu0 %217
    %v221 = vperm.slane %v103, 0
    %v223 = vmul.f32 %v218, %v221
    %v224 = vadd.f32 %v213, %v223
    %v225 = vadd.f32 %v106, %v177
    %v226 = vld [vmem:[#allocation12] sm:$0xff]
    %v227 = vld [vmem:[#allocation12 + $0x8] sm:$0xff]
    %v228 = vld [vmem:[#allocation12 + $0x10] sm:$0xff]
    %v229 = vld [vmem:[#allocation12 + $0x18] sm:$0xff]
    %v230 = vld [vmem:[#allocation12 + $0x20] sm:$0xff]
    %v231 = vld [vmem:[#allocation12 + $0x28] sm:$0xff]
    %v232 = vld [vmem:[#allocation12 + $0x30] sm:$0xff]
    %v233 = vld [vmem:[#allocation12 + $0x38] sm:$0xff]
    %v234 = vld [vmem:[#allocation12 + $0x40] sm:$0xff]
    %v235 = vld [vmem:[#allocation12 + $0x48] sm:$0xff]
    %v236 = vld [vmem:[#allocation12 + $0x50] sm:$0xff]
    %v237 = vld [vmem:[#allocation12 + $0x58] sm:$0xff]
    %v238 = vld [vmem:[#allocation12 + $0x60] sm:$0xff]
    %v239 = vld [vmem:[#allocation12 + $0x68] sm:$0xff]
    %v240 = vld [vmem:[#allocation12 + $0x70] sm:$0xff]
    %v241 = vld [vmem:[#allocation12 + $0x78] sm:$0xff]
    %242 = vmatpush.msra.mxu0 %v241
    %243 = vmatpush.msra.mxu0 %v240
    %244 = vmatpush.msra.mxu0 %v239
    %245 = vmatpush.msra.mxu0 %v238
    %246 = vmatpush.msra.mxu0 %v237
    %247 = vmatpush.msra.mxu0 %v236
    %248 = vmatpush.msra.mxu0 %v235
    %249 = vmatpush.msra.mxu0 %v234
    %250 = vmatpush.msra.mxu0 %v233
    %251 = vmatpush.msra.mxu0 %v232
    %252 = vmatpush.msra.mxu0 %v231
    %253 = vmatpush.msra.mxu0 %v230
    %254 = vmatpush.msra.mxu0 %v229
    %255 = vmatpush.msra.mxu0 %v228
    %256 = vmatpush.msra.mxu0 %v227
    %257 = vmatpush.msra.mxu0 %v226
    %258 = vmatmul.f32.gmra.mxu0 %v224
    %v259 = vpop.f32.mrf.mxu0
    %v260 = vadd.f32 0.0, %v259
    %261 = vdwg.mxu0
    %v262 = vadd.f32 %v225, %v260
    %v263 = vtanh.pop %v262
    %s264 = scalar_lea.vmem [#allocation4], 8
    %v265 = vld [vmem:[%s264] sm:$0xff]
    %266 = vmatpush.msra.mxu0 %v137
    %267 = vmatpush.msra.mxu0 %v135
    %268 = vmatpush.msra.mxu0 %v133
    %269 = vmatpush.msra.mxu0 %v131
    %270 = vmatpush.msra.mxu0 %v129
    %271 = vmatpush.msra.mxu0 %v127
    %272 = vmatpush.msra.mxu0 %v125
    %273 = vmatpush.msra.mxu0 %v123
    %274 = vmatpush.msra.mxu0 %v121
    %275 = vmatpush.msra.mxu0 %v119
    %276 = vmatpush.msra.mxu0 %v117
    %277 = vmatpush.msra.mxu0 %v115
    %278 = vmatpush.msra.mxu0 %v113
    %279 = vmatpush.msra.mxu0 %v111
    %280 = vmatpush.msra.mxu0 %v109
    %281 = vmatpush.msra.mxu0 %v107
    %282 = vmatmul.f32.gmra.mxu0 %v263
    %v283 = vpop.f32.mrf.mxu0
    %v284 = vadd.f32 0.0, %v283
    %285 = vdwg.mxu0
    %286 = vmatpush.msra.mxu0 %v138
    %287 = vmatpush.msra.mxu0 %v136
    %288 = vmatpush.msra.mxu0 %v134
    %289 = vmatpush.msra.mxu0 %v132
    %290 = vmatpush.msra.mxu0 %v130
    %291 = vmatpush.msra.mxu0 %v128
    %292 = vmatpush.msra.mxu0 %v126
    %293 = vmatpush.msra.mxu0 %v124
    %294 = vmatpush.msra.mxu0 %v122
    %295 = vmatpush.msra.mxu0 %v120
    %296 = vmatpush.msra.mxu0 %v118
    %297 = vmatpush.msra.mxu0 %v116
    %298 = vmatpush.msra.mxu0 %v114
    %299 = vmatpush.msra.mxu0 %v112
    %300 = vmatpush.msra.mxu0 %v110
    %301 = vmatpush.msra.mxu0 %v108
    %302 = vmatmul.f32.gmra.mxu0 %v263
    %v303 = vpop.f32.mrf.mxu0
    %v304 = vadd.f32 0.0, %v303
    %305 = vdwg.mxu0
    %306 = vmatpush.msra.mxu0 %v194
    %307 = vmatpush.msra.mxu0 %v193
    %308 = vmatpush.msra.mxu0 %v192
    %309 = vmatpush.msra.mxu0 %v191
    %310 = vmatpush.msra.mxu0 %v190
    %311 = vmatpush.msra.mxu0 %v189
    %312 = vmatpush.msra.mxu0 %v188
    %313 = vmatpush.msra.mxu0 %v187
    %314 = vmatpush.msra.mxu0 %v186
    %315 = vmatpush.msra.mxu0 %v185
    %316 = vmatpush.msra.mxu0 %v184
    %317 = vmatpush.msra.mxu0 %v183
    %318 = vmatpush.msra.mxu0 %v182
    %319 = vmatpush.msra.mxu0 %v181
    %320 = vmatpush.msra.mxu0 %v180
    %321 = vmatpush.msra.mxu0 %v179
    %322 = vmatmul.f32.gmra.mxu0 %v224
    %v323 = vpop.f32.mrf.mxu0
    %v324 = vadd.f32 %v284, %v323
    %325 = vdwg.mxu0
    %327 = vset.pattern.permute.xlu0 127
    %328 = vperm.xlu0 %327, %v265
    %v329 = vpop.permute.xlu0 %328
    %v331 = vmul.f32 %v329, %v221
    %v332 = vadd.f32 %v324, %v331
    %v333 = vadd.f32 %v265, %v304
    %334 = vmatpush.msra.mxu0 %v241
    %335 = vmatpush.msra.mxu0 %v240
    %336 = vmatpush.msra.mxu0 %v239
    %337 = vmatpush.msra.mxu0 %v238
    %338 = vmatpush.msra.mxu0 %v237
    %339 = vmatpush.msra.mxu0 %v236
    %340 = vmatpush.msra.mxu0 %v235
    %341 = vmatpush.msra.mxu0 %v234
    %342 = vmatpush.msra.mxu0 %v233
    %343 = vmatpush.msra.mxu0 %v232
    %344 = vmatpush.msra.mxu0 %v231
    %345 = vmatpush.msra.mxu0 %v230
    %346 = vmatpush.msra.mxu0 %v229
    %347 = vmatpush.msra.mxu0 %v228
    %348 = vmatpush.msra.mxu0 %v227
    %349 = vmatpush.msra.mxu0 %v226
    %350 = vmatmul.f32.gmra.mxu0 %v332
    %v351 = vpop.f32.mrf.mxu0
    %v352 = vadd.f32 0.0, %v351
    %353 = vdwg.mxu0
    %v354 = vadd.f32 %v333, %v352
    %v355 = vtanh.pop %v354
    %s356 = scalar_lea.vmem [#allocation4], 16
    %v357 = vld [vmem:[%s356] sm:$0xff]
    %358 = vmatpush.msra.mxu0 %v137
    %359 = vmatpush.msra.mxu0 %v135
    %360 = vmatpush.msra.mxu0 %v133
    %361 = vmatpush.msra.mxu0 %v131
    %362 = vmatpush.msra.mxu0 %v129
    %363 = vmatpush.msra.mxu0 %v127
    %364 = vmatpush.msra.mxu0 %v125
    %365 = vmatpush.msra.mxu0 %v123
    %366 = vmatpush.msra.mxu0 %v121
    %367 = vmatpush.msra.mxu0 %v119
    %368 = vmatpush.msra.mxu0 %v117
    %369 = vmatpush.msra.mxu0 %v115
    %370 = vmatpush.msra.mxu0 %v113
    %371 = vmatpush.msra.mxu0 %v111
    %372 = vmatpush.msra.mxu0 %v109
    %373 = vmatpush.msra.mxu0 %v107
    %374 = vmatmul.f32.gmra.mxu0 %v355
    %v375 = vpop.f32.mrf.mxu0
    %v376 = vadd.f32 0.0, %v375
    %377 = vdwg.mxu0
    %378 = vmatpush.msra.mxu0 %v138
    %379 = vmatpush.msra.mxu0 %v136
    %380 = vmatpush.msra.mxu0 %v134
    %381 = vmatpush.msra.mxu0 %v132
    %382 = vmatpush.msra.mxu0 %v130
    %383 = vmatpush.msra.mxu0 %v128
    %384 = vmatpush.msra.mxu0 %v126
    %385 = vmatpush.msra.mxu0 %v124
    %386 = vmatpush.msra.mxu0 %v122
    %387 = vmatpush.msra.mxu0 %v120
    %388 = vmatpush.msra.mxu0 %v118
    %389 = vmatpush.msra.mxu0 %v116
    %390 = vmatpush.msra.mxu0 %v114
    %391 = vmatpush.msra.mxu0 %v112
    %392 = vmatpush.msra.mxu0 %v110
    %393 = vmatpush.msra.mxu0 %v108
    %394 = vmatmul.f32.gmra.mxu0 %v355
    %v395 = vpop.f32.mrf.mxu0
    %v396 = vadd.f32 0.0, %v395
    %397 = vdwg.mxu0
    %398 = vmatpush.msra.mxu0 %v194
    %399 = vmatpush.msra.mxu0 %v193
    %400 = vmatpush.msra.mxu0 %v192
    %401 = vmatpush.msra.mxu0 %v191
    %402 = vmatpush.msra.mxu0 %v190
    %403 = vmatpush.msra.mxu0 %v189
    %404 = vmatpush.msra.mxu0 %v188
    %405 = vmatpush.msra.mxu0 %v187
    %406 = vmatpush.msra.mxu0 %v186
    %407 = vmatpush.msra.mxu0 %v185
    %408 = vmatpush.msra.mxu0 %v184
    %409 = vmatpush.msra.mxu0 %v183
    %410 = vmatpush.msra.mxu0 %v182
    %411 = vmatpush.msra.mxu0 %v181
    %412 = vmatpush.msra.mxu0 %v180
    %413 = vmatpush.msra.mxu0 %v179
    %414 = vmatmul.f32.gmra.mxu0 %v332
    %v415 = vpop.f32.mrf.mxu0
    %v416 = vadd.f32 %v376, %v415
    %417 = vdwg.mxu0
    %419 = vset.pattern.permute.xlu0 127
    %420 = vperm.xlu0 %419, %v357
    %v421 = vpop.permute.xlu0 %420
    %v423 = vmul.f32 %v421, %v221
    %v424 = vadd.f32 %v416, %v423
    %v425 = vadd.f32 %v357, %v396
    %426 = vmatpush.msra.mxu0 %v241
    %427 = vmatpush.msra.mxu0 %v240
    %428 = vmatpush.msra.mxu0 %v239
    %429 = vmatpush.msra.mxu0 %v238
    %430 = vmatpush.msra.mxu0 %v237
    %431 = vmatpush.msra.mxu0 %v236
    %432 = vmatpush.msra.mxu0 %v235
    %433 = vmatpush.msra.mxu0 %v234
    %434 = vmatpush.msra.mxu0 %v233
    %435 = vmatpush.msra.mxu0 %v232
    %436 = vmatpush.msra.mxu0 %v231
    %437 = vmatpush.msra.mxu0 %v230
    %438 = vmatpush.msra.mxu0 %v229
    %439 = vmatpush.msra.mxu0 %v228
    %440 = vmatpush.msra.mxu0 %v227
    %441 = vmatpush.msra.mxu0 %v226
    %442 = vmatmul.f32.gmra.mxu0 %v424
    %v443 = vpop.f32.mrf.mxu0
    %v444 = vadd.f32 0.0, %v443
    %445 = vdwg.mxu0
    %v446 = vadd.f32 %v425, %v444
    %v447 = vtanh.pop %v446
    %s448 = scalar_lea.vmem [#allocation4], 24
    %v449 = vld [vmem:[%s448] sm:$0xff]
    %450 = vmatpush.msra.mxu0 %v137
    %451 = vmatpush.msra.mxu0 %v135
    %452 = vmatpush.msra.mxu0 %v133
    %453 = vmatpush.msra.mxu0 %v131
    %454 = vmatpush.msra.mxu0 %v129
    %455 = vmatpush.msra.mxu0 %v127
    %456 = vmatpush.msra.mxu0 %v125
    %457 = vmatpush.msra.mxu0 %v123
    %458 = vmatpush.msra.mxu0 %v121
    %459 = vmatpush.msra.mxu0 %v119
    %460 = vmatpush.msra.mxu0 %v117
    %461 = vmatpush.msra.mxu0 %v115
    %462 = vmatpush.msra.mxu0 %v113
    %463 = vmatpush.msra.mxu0 %v111
    %464 = vmatpush.msra.mxu0 %v109
    %465 = vmatpush.msra.mxu0 %v107
    %466 = vmatmul.f32.gmra.mxu0 %v447
    %v467 = vpop.f32.mrf.mxu0
    %v468 = vadd.f32 0.0, %v467
    %469 = vdwg.mxu0
    %470 = vmatpush.msra.mxu0 %v138
    %471 = vmatpush.msra.mxu0 %v136
    %472 = vmatpush.msra.mxu0 %v134
    %473 = vmatpush.msra.mxu0 %v132
    %474 = vmatpush.msra.mxu0 %v130
    %475 = vmatpush.msra.mxu0 %v128
    %476 = vmatpush.msra.mxu0 %v126
    %477 = vmatpush.msra.mxu0 %v124
    %478 = vmatpush.msra.mxu0 %v122
    %479 = vmatpush.msra.mxu0 %v120
    %480 = vmatpush.msra.mxu0 %v118
    %481 = vmatpush.msra.mxu0 %v116
    %482 = vmatpush.msra.mxu0 %v114
    %483 = vmatpush.msra.mxu0 %v112
    %484 = vmatpush.msra.mxu0 %v110
    %485 = vmatpush.msra.mxu0 %v108
    %486 = vmatmul.f32.gmra.mxu0 %v447
    %v487 = vpop.f32.mrf.mxu0
    %v488 = vadd.f32 0.0, %v487
    %489 = vdwg.mxu0
    %490 = vmatpush.msra.mxu0 %v194
    %491 = vmatpush.msra.mxu0 %v193
    %492 = vmatpush.msra.mxu0 %v192
    %493 = vmatpush.msra.mxu0 %v191
    %494 = vmatpush.msra.mxu0 %v190
    %495 = vmatpush.msra.mxu0 %v189
    %496 = vmatpush.msra.mxu0 %v188
    %497 = vmatpush.msra.mxu0 %v187
    %498 = vmatpush.msra.mxu0 %v186
    %499 = vmatpush.msra.mxu0 %v185
    %500 = vmatpush.msra.mxu0 %v184
    %501 = vmatpush.msra.mxu0 %v183
    %502 = vmatpush.msra.mxu0 %v182
    %503 = vmatpush.msra.mxu0 %v181
    %504 = vmatpush.msra.mxu0 %v180
    %505 = vmatpush.msra.mxu0 %v179
    %506 = vmatmul.f32.gmra.mxu0 %v424
    %v507 = vpop.f32.mrf.mxu0
    %v508 = vadd.f32 %v468, %v507
    %509 = vdwg.mxu0
    %511 = vset.pattern.permute.xlu0 127
    %512 = vperm.xlu0 %511, %v449
    %v513 = vpop.permute.xlu0 %512
    %v515 = vmul.f32 %v513, %v221
    %v516 = vadd.f32 %v508, %v515
    %v517 = vadd.f32 %v449, %v488
    %518 = vmatpush.msra.mxu0 %v241
    %519 = vmatpush.msra.mxu0 %v240
    %520 = vmatpush.msra.mxu0 %v239
    %521 = vmatpush.msra.mxu0 %v238
    %522 = vmatpush.msra.mxu0 %v237
    %523 = vmatpush.msra.mxu0 %v236
    %524 = vmatpush.msra.mxu0 %v235
    %525 = vmatpush.msra.mxu0 %v234
    %526 = vmatpush.msra.mxu0 %v233
    %527 = vmatpush.msra.mxu0 %v232
    %528 = vmatpush.msra.mxu0 %v231
    %529 = vmatpush.msra.mxu0 %v230
    %530 = vmatpush.msra.mxu0 %v229
    %531 = vmatpush.msra.mxu0 %v228
    %532 = vmatpush.msra.mxu0 %v227
    %533 = vmatpush.msra.mxu0 %v226
    %534 = vmatmul.f32.gmra.mxu0 %v516
    %v535 = vpop.f32.mrf.mxu0
    %v536 = vadd.f32 0.0, %v535
    %537 = vdwg.mxu0
    %v538 = vadd.f32 %v517, %v536
    %v539 = vtanh.pop %v538
    %s540 = scalar_lea.vmem [#allocation4], 32
    %v541 = vld [vmem:[%s540] sm:$0xff]
    %542 = vmatpush.msra.mxu0 %v137
    %543 = vmatpush.msra.mxu0 %v135
    %544 = vmatpush.msra.mxu0 %v133
    %545 = vmatpush.msra.mxu0 %v131
    %546 = vmatpush.msra.mxu0 %v129
    %547 = vmatpush.msra.mxu0 %v127
    %548 = vmatpush.msra.mxu0 %v125
    %549 = vmatpush.msra.mxu0 %v123
    %550 = vmatpush.msra.mxu0 %v121
    %551 = vmatpush.msra.mxu0 %v119
    %552 = vmatpush.msra.mxu0 %v117
    %553 = vmatpush.msra.mxu0 %v115
    %554 = vmatpush.msra.mxu0 %v113
    %555 = vmatpush.msra.mxu0 %v111
    %556 = vmatpush.msra.mxu0 %v109
    %557 = vmatpush.msra.mxu0 %v107
    %558 = vmatmul.f32.gmra.mxu0 %v539
    %v559 = vpop.f32.mrf.mxu0
    %v560 = vadd.f32 0.0, %v559
    %561 = vdwg.mxu0
    %562 = vmatpush.msra.mxu0 %v138
    %563 = vmatpush.msra.mxu0 %v136
    %564 = vmatpush.msra.mxu0 %v134
    %565 = vmatpush.msra.mxu0 %v132
    %566 = vmatpush.msra.mxu0 %v130
    %567 = vmatpush.msra.mxu0 %v128
    %568 = vmatpush.msra.mxu0 %v126
    %569 = vmatpush.msra.mxu0 %v124
    %570 = vmatpush.msra.mxu0 %v122
    %571 = vmatpush.msra.mxu0 %v120
    %572 = vmatpush.msra.mxu0 %v118
    %573 = vmatpush.msra.mxu0 %v116
    %574 = vmatpush.msra.mxu0 %v114
    %575 = vmatpush.msra.mxu0 %v112
    %576 = vmatpush.msra.mxu0 %v110
    %577 = vmatpush.msra.mxu0 %v108
    %578 = vmatmul.f32.gmra.mxu0 %v539
    %v579 = vpop.f32.mrf.mxu0
    %v580 = vadd.f32 0.0, %v579
    %581 = vdwg.mxu0
    %582 = vmatpush.msra.mxu0 %v194
    %583 = vmatpush.msra.mxu0 %v193
    %584 = vmatpush.msra.mxu0 %v192
    %585 = vmatpush.msra.mxu0 %v191
    %586 = vmatpush.msra.mxu0 %v190
    %587 = vmatpush.msra.mxu0 %v189
    %588 = vmatpush.msra.mxu0 %v188
    %589 = vmatpush.msra.mxu0 %v187
    %590 = vmatpush.msra.mxu0 %v186
    %591 = vmatpush.msra.mxu0 %v185
    %592 = vmatpush.msra.mxu0 %v184
    %593 = vmatpush.msra.mxu0 %v183
    %594 = vmatpush.msra.mxu0 %v182
    %595 = vmatpush.msra.mxu0 %v181
    %596 = vmatpush.msra.mxu0 %v180
    %597 = vmatpush.msra.mxu0 %v179
    %598 = vmatmul.f32.gmra.mxu0 %v516
    %v599 = vpop.f32.mrf.mxu0
    %v600 = vadd.f32 %v560, %v599
    %601 = vdwg.mxu0
    %603 = vset.pattern.permute.xlu0 127
    %604 = vperm.xlu0 %603, %v541
    %v605 = vpop.permute.xlu0 %604
    %v607 = vmul.f32 %v605, %v221
    %v608 = vadd.f32 %v600, %v607
    %v609 = vadd.f32 %v541, %v580
    %610 = vmatpush.msra.mxu0 %v241
    %611 = vmatpush.msra.mxu0 %v240
    %612 = vmatpush.msra.mxu0 %v239
    %613 = vmatpush.msra.mxu0 %v238
    %614 = vmatpush.msra.mxu0 %v237
    %615 = vmatpush.msra.mxu0 %v236
    %616 = vmatpush.msra.mxu0 %v235
    %617 = vmatpush.msra.mxu0 %v234
    %618 = vmatpush.msra.mxu0 %v233
    %619 = vmatpush.msra.mxu0 %v232
    %620 = vmatpush.msra.mxu0 %v231
    %621 = vmatpush.msra.mxu0 %v230
    %622 = vmatpush.msra.mxu0 %v229
    %623 = vmatpush.msra.mxu0 %v228
    %624 = vmatpush.msra.mxu0 %v227
    %625 = vmatpush.msra.mxu0 %v226
    %626 = vmatmul.f32.gmra.mxu0 %v608
    %v627 = vpop.f32.mrf.mxu0
    %v628 = vadd.f32 0.0, %v627
    %629 = vdwg.mxu0
    %v630 = vadd.f32 %v609, %v628
    %v631 = vtanh.pop %v630
    %s632 = scalar_lea.vmem [#allocation4], 40
    %v633 = vld [vmem:[%s632] sm:$0xff]
    %634 = vmatpush.msra.mxu0 %v137
    %635 = vmatpush.msra.mxu0 %v135
    %636 = vmatpush.msra.mxu0 %v133
    %637 = vmatpush.msra.mxu0 %v131
    %638 = vmatpush.msra.mxu0 %v129
    %639 = vmatpush.msra.mxu0 %v127
    %640 = vmatpush.msra.mxu0 %v125
    %641 = vmatpush.msra.mxu0 %v123
    %642 = vmatpush.msra.mxu0 %v121
    %643 = vmatpush.msra.mxu0 %v119
    %644 = vmatpush.msra.mxu0 %v117
    %645 = vmatpush.msra.mxu0 %v115
    %646 = vmatpush.msra.mxu0 %v113
    %647 = vmatpush.msra.mxu0 %v111
    %648 = vmatpush.msra.mxu0 %v109
    %649 = vmatpush.msra.mxu0 %v107
    %650 = vmatmul.f32.gmra.mxu0 %v631
    %v651 = vpop.f32.mrf.mxu0
    %v652 = vadd.f32 0.0, %v651
    %653 = vdwg.mxu0
    %654 = vmatpush.msra.mxu0 %v138
    %655 = vmatpush.msra.mxu0 %v136
    %656 = vmatpush.msra.mxu0 %v134
    %657 = vmatpush.msra.mxu0 %v132
    %658 = vmatpush.msra.mxu0 %v130
    %659 = vmatpush.msra.mxu0 %v128
    %660 = vmatpush.msra.mxu0 %v126
    %661 = vmatpush.msra.mxu0 %v124
    %662 = vmatpush.msra.mxu0 %v122
    %663 = vmatpush.msra.mxu0 %v120
    %664 = vmatpush.msra.mxu0 %v118
    %665 = vmatpush.msra.mxu0 %v116
    %666 = vmatpush.msra.mxu0 %v114
    %667 = vmatpush.msra.mxu0 %v112
    %668 = vmatpush.msra.mxu0 %v110
    %669 = vmatpush.msra.mxu0 %v108
    %670 = vmatmul.f32.gmra.mxu0 %v631
    %v671 = vpop.f32.mrf.mxu0
    %v672 = vadd.f32 0.0, %v671
    %673 = vdwg.mxu0
    %674 = vmatpush.msra.mxu0 %v194
    %675 = vmatpush.msra.mxu0 %v193
    %676 = vmatpush.msra.mxu0 %v192
    %677 = vmatpush.msra.mxu0 %v191
    %678 = vmatpush.msra.mxu0 %v190
    %679 = vmatpush.msra.mxu0 %v189
    %680 = vmatpush.msra.mxu0 %v188
    %681 = vmatpush.msra.mxu0 %v187
    %682 = vmatpush.msra.mxu0 %v186
    %683 = vmatpush.msra.mxu0 %v185
    %684 = vmatpush.msra.mxu0 %v184
    %685 = vmatpush.msra.mxu0 %v183
    %686 = vmatpush.msra.mxu0 %v182
    %687 = vmatpush.msra.mxu0 %v181
    %688 = vmatpush.msra.mxu0 %v180
    %689 = vmatpush.msra.mxu0 %v179
    %690 = vmatmul.f32.gmra.mxu0 %v608
    %v691 = vpop.f32.mrf.mxu0
    %v692 = vadd.f32 %v652, %v691
    %693 = vdwg.mxu0
    %695 = vset.pattern.permute.xlu0 127
    %696 = vperm.xlu0 %695, %v633
    %v697 = vpop.permute.xlu0 %696
    %v699 = vmul.f32 %v697, %v221
    %v700 = vadd.f32 %v692, %v699
    %v701 = vadd.f32 %v633, %v672
    %702 = vmatpush.msra.mxu0 %v241
    %703 = vmatpush.msra.mxu0 %v240
    %704 = vmatpush.msra.mxu0 %v239
    %705 = vmatpush.msra.mxu0 %v238
    %706 = vmatpush.msra.mxu0 %v237
    %707 = vmatpush.msra.mxu0 %v236
    %708 = vmatpush.msra.mxu0 %v235
    %709 = vmatpush.msra.mxu0 %v234
    %710 = vmatpush.msra.mxu0 %v233
    %711 = vmatpush.msra.mxu0 %v232
    %712 = vmatpush.msra.mxu0 %v231
    %713 = vmatpush.msra.mxu0 %v230
    %714 = vmatpush.msra.mxu0 %v229
    %715 = vmatpush.msra.mxu0 %v228
    %716 = vmatpush.msra.mxu0 %v227
    %717 = vmatpush.msra.mxu0 %v226
    %718 = vmatmul.f32.gmra.mxu0 %v700
    %v719 = vpop.f32.mrf.mxu0
    %v720 = vadd.f32 0.0, %v719
    %721 = vdwg.mxu0
    %v722 = vadd.f32 %v701, %v720
    %v723 = vtanh.pop %v722
    %s724 = scalar_lea.vmem [#allocation4], 48
    %v725 = vld [vmem:[%s724] sm:$0xff]
    %726 = vmatpush.msra.mxu0 %v137
    %727 = vmatpush.msra.mxu0 %v135
    %728 = vmatpush.msra.mxu0 %v133
    %729 = vmatpush.msra.mxu0 %v131
    %730 = vmatpush.msra.mxu0 %v129
    %731 = vmatpush.msra.mxu0 %v127
    %732 = vmatpush.msra.mxu0 %v125
    %733 = vmatpush.msra.mxu0 %v123
    %734 = vmatpush.msra.mxu0 %v121
    %735 = vmatpush.msra.mxu0 %v119
    %736 = vmatpush.msra.mxu0 %v117
    %737 = vmatpush.msra.mxu0 %v115
    %738 = vmatpush.msra.mxu0 %v113
    %739 = vmatpush.msra.mxu0 %v111
    %740 = vmatpush.msra.mxu0 %v109
    %741 = vmatpush.msra.mxu0 %v107
    %742 = vmatmul.f32.gmra.mxu0 %v723
    %v743 = vpop.f32.mrf.mxu0
    %v744 = vadd.f32 0.0, %v743
    %745 = vdwg.mxu0
    %746 = vmatpush.msra.mxu0 %v138
    %747 = vmatpush.msra.mxu0 %v136
    %748 = vmatpush.msra.mxu0 %v134
    %749 = vmatpush.msra.mxu0 %v132
    %750 = vmatpush.msra.mxu0 %v130
    %751 = vmatpush.msra.mxu0 %v128
    %752 = vmatpush.msra.mxu0 %v126
    %753 = vmatpush.msra.mxu0 %v124
    %754 = vmatpush.msra.mxu0 %v122
    %755 = vmatpush.msra.mxu0 %v120
    %756 = vmatpush.msra.mxu0 %v118
    %757 = vmatpush.msra.mxu0 %v116
    %758 = vmatpush.msra.mxu0 %v114
    %759 = vmatpush.msra.mxu0 %v112
    %760 = vmatpush.msra.mxu0 %v110
    %761 = vmatpush.msra.mxu0 %v108
    %762 = vmatmul.f32.gmra.mxu0 %v723
    %v763 = vpop.f32.mrf.mxu0
    %v764 = vadd.f32 0.0, %v763
    %765 = vdwg.mxu0
    %766 = vmatpush.msra.mxu0 %v194
    %767 = vmatpush.msra.mxu0 %v193
    %768 = vmatpush.msra.mxu0 %v192
    %769 = vmatpush.msra.mxu0 %v191
    %770 = vmatpush.msra.mxu0 %v190
    %771 = vmatpush.msra.mxu0 %v189
    %772 = vmatpush.msra.mxu0 %v188
    %773 = vmatpush.msra.mxu0 %v187
    %774 = vmatpush.msra.mxu0 %v186
    %775 = vmatpush.msra.mxu0 %v185
    %776 = vmatpush.msra.mxu0 %v184
    %777 = vmatpush.msra.mxu0 %v183
    %778 = vmatpush.msra.mxu0 %v182
    %779 = vmatpush.msra.mxu0 %v181
    %780 = vmatpush.msra.mxu0 %v180
    %781 = vmatpush.msra.mxu0 %v179
    %782 = vmatmul.f32.gmra.mxu0 %v700
    %v783 = vpop.f32.mrf.mxu0
    %v784 = vadd.f32 %v744, %v783
    %785 = vdwg.mxu0
    %787 = vset.pattern.permute.xlu0 127
    %788 = vperm.xlu0 %787, %v725
    %v789 = vpop.permute.xlu0 %788
    %v791 = vmul.f32 %v789, %v221
    %v792 = vadd.f32 %v784, %v791
    %v793 = vadd.f32 %v725, %v764
    %794 = vmatpush.msra.mxu0 %v241
    %795 = vmatpush.msra.mxu0 %v240
    %796 = vmatpush.msra.mxu0 %v239
    %797 = vmatpush.msra.mxu0 %v238
    %798 = vmatpush.msra.mxu0 %v237
    %799 = vmatpush.msra.mxu0 %v236
    %800 = vmatpush.msra.mxu0 %v235
    %801 = vmatpush.msra.mxu0 %v234
    %802 = vmatpush.msra.mxu0 %v233
    %803 = vmatpush.msra.mxu0 %v232
    %804 = vmatpush.msra.mxu0 %v231
    %805 = vmatpush.msra.mxu0 %v230
    %806 = vmatpush.msra.mxu0 %v229
    %807 = vmatpush.msra.mxu0 %v228
    %808 = vmatpush.msra.mxu0 %v227
    %809 = vmatpush.msra.mxu0 %v226
    %810 = vmatmul.f32.gmra.mxu0 %v792
    %v811 = vpop.f32.mrf.mxu0
    %v812 = vadd.f32 0.0, %v811
    %813 = vdwg.mxu0
    %v814 = vadd.f32 %v793, %v812
    %v815 = vtanh.pop %v814
    %s816 = scalar_lea.vmem [#allocation4], 56
    %v817 = vld [vmem:[%s816] sm:$0xff]
    %818 = vmatpush.msra.mxu0 %v137
    %819 = vmatpush.msra.mxu0 %v135
    %820 = vmatpush.msra.mxu0 %v133
    %821 = vmatpush.msra.mxu0 %v131
    %822 = vmatpush.msra.mxu0 %v129
    %823 = vmatpush.msra.mxu0 %v127
    %824 = vmatpush.msra.mxu0 %v125
    %825 = vmatpush.msra.mxu0 %v123
    %826 = vmatpush.msra.mxu0 %v121
    %827 = vmatpush.msra.mxu0 %v119
    %828 = vmatpush.msra.mxu0 %v117
    %829 = vmatpush.msra.mxu0 %v115
    %830 = vmatpush.msra.mxu0 %v113
    %831 = vmatpush.msra.mxu0 %v111
    %832 = vmatpush.msra.mxu0 %v109
    %833 = vmatpush.msra.mxu0 %v107
    %834 = vmatmul.f32.gmra.mxu0 %v815
    %v835 = vpop.f32.mrf.mxu0
    %v836 = vadd.f32 0.0, %v835
    %837 = vdwg.mxu0
    %838 = vmatpush.msra.mxu0 %v138
    %839 = vmatpush.msra.mxu0 %v136
    %840 = vmatpush.msra.mxu0 %v134
    %841 = vmatpush.msra.mxu0 %v132
    %842 = vmatpush.msra.mxu0 %v130
    %843 = vmatpush.msra.mxu0 %v128
    %844 = vmatpush.msra.mxu0 %v126
    %845 = vmatpush.msra.mxu0 %v124
    %846 = vmatpush.msra.mxu0 %v122
    %847 = vmatpush.msra.mxu0 %v120
    %848 = vmatpush.msra.mxu0 %v118
    %849 = vmatpush.msra.mxu0 %v116
    %850 = vmatpush.msra.mxu0 %v114
    %851 = vmatpush.msra.mxu0 %v112
    %852 = vmatpush.msra.mxu0 %v110
    %853 = vmatpush.msra.mxu0 %v108
    %854 = vmatmul.f32.gmra.mxu0 %v815
    %v855 = vpop.f32.mrf.mxu0
    %v856 = vadd.f32 0.0, %v855
    %857 = vdwg.mxu0
    %858 = vmatpush.msra.mxu0 %v194
    %859 = vmatpush.msra.mxu0 %v193
    %860 = vmatpush.msra.mxu0 %v192
    %861 = vmatpush.msra.mxu0 %v191
    %862 = vmatpush.msra.mxu0 %v190
    %863 = vmatpush.msra.mxu0 %v189
    %864 = vmatpush.msra.mxu0 %v188
    %865 = vmatpush.msra.mxu0 %v187
    %866 = vmatpush.msra.mxu0 %v186
    %867 = vmatpush.msra.mxu0 %v185
    %868 = vmatpush.msra.mxu0 %v184
    %869 = vmatpush.msra.mxu0 %v183
    %870 = vmatpush.msra.mxu0 %v182
    %871 = vmatpush.msra.mxu0 %v181
    %872 = vmatpush.msra.mxu0 %v180
    %873 = vmatpush.msra.mxu0 %v179
    %874 = vmatmul.f32.gmra.mxu0 %v792
    %v875 = vpop.f32.mrf.mxu0
    %v876 = vadd.f32 %v836, %v875
    %877 = vdwg.mxu0
    %879 = vset.pattern.permute.xlu0 127
    %880 = vperm.xlu0 %879, %v817
    %v881 = vpop.permute.xlu0 %880
    %v883 = vmul.f32 %v881, %v221
    %v884 = vadd.f32 %v876, %v883
    %v885 = vadd.f32 %v817, %v856
    %886 = vmatpush.msra.mxu0 %v241
    %887 = vmatpush.msra.mxu0 %v240
    %888 = vmatpush.msra.mxu0 %v239
    %889 = vmatpush.msra.mxu0 %v238
    %890 = vmatpush.msra.mxu0 %v237
    %891 = vmatpush.msra.mxu0 %v236
    %892 = vmatpush.msra.mxu0 %v235
    %893 = vmatpush.msra.mxu0 %v234
    %894 = vmatpush.msra.mxu0 %v233
    %895 = vmatpush.msra.mxu0 %v232
    %896 = vmatpush.msra.mxu0 %v231
    %897 = vmatpush.msra.mxu0 %v230
    %898 = vmatpush.msra.mxu0 %v229
    %899 = vmatpush.msra.mxu0 %v228
    %900 = vmatpush.msra.mxu0 %v227
    %901 = vmatpush.msra.mxu0 %v226
    %902 = vmatmul.f32.gmra.mxu0 %v884
    %v903 = vpop.f32.mrf.mxu0
    %v904 = vadd.f32 0.0, %v903
    %905 = vdwg.mxu0
    %v906 = vadd.f32 %v885, %v904
    %v907 = vtanh.pop %v906
    %908 = vst [vmem:[#allocation2] sm:$0xff] %v907
    %909 = vst [vmem:[#allocation3] sm:$0xff] %v884
    // Predicated region
    $region46: #{tpu_custom_call.1} parent=1 // pred_check
      %p910 = pneg %p97
    $region47: #{tpu_custom_call.1} parent=1 // pred_check_branch
      %912 = sbr.rel (%p910) target = $region49
    $region48: #{tpu_custom_call.1} parent=1 // pred_region
      %913 = vst [vmem:[#allocation13] sm:$0xff] %v907
    $region49: #{tpu_custom_call.1} parent=1 // pred_fallthru
      _
    // Predicated region
    $region50: #{tpu_custom_call.1} parent=1 // pred_check
      _
    $region51: #{tpu_custom_call.1} parent=1 // pred_check_branch
      %915 = sbr.rel (0) target = $region53
    $region52: #{tpu_custom_call.1} parent=1 // pred_region
      %917 = vsyncadd [#allocation6], 0
      %s919 = sshll.u32 [#allocation13], 4
      %s920 = int_to_ptr.vmem [resolvable:$true] %s919
      %s921 = sshll.u32 %s5, 4
      %s922 = int_to_ptr.hbm [resolvable:$true] %s921
      %924 = dma.vmem_to_hbm [thread:$0]  %s920, 128, %s922, [#allocation6]
    $region53: #{tpu_custom_call.1} parent=1 // pred_fallthru
      _
    // Predicated region
    $region54: #{tpu_custom_call.1} parent=1 // pred_check
      _
    $region55: #{tpu_custom_call.1} parent=1 // pred_check_branch
      %926 = sbr.rel (0) target = $region57
    $region56: #{tpu_custom_call.1} parent=1 // pred_region
      %928 = dma.done [#allocation6], 128
    $region57: #{tpu_custom_call.1} parent=1 // pred_fallthru
      _
    %929 = vsyncpa [#allocation5], 1
    %930 = vsyncpa [#allocation8], 1
    %931 = vsyncpa [#allocation11], 1
    %932 = vsyncpa [#allocation6], 1

</llo_original>
